<compile_context>
chip_gen: v6e
topology: v6e:2x2x1
jax: 0.10.0
libtpu: 0.0.40
codegen_flags: <defaults>
</compile_context>

<pallas_src>
import math

import jax
import jax.numpy as jnp
from jax import lax
from jax.experimental import pallas as pl
from jax.experimental.pallas import tpu as pltpu

STATE_DIM = 6        # HIVPatient observation_space.shape[0]
STATE_PAD = 8        # sublane-aligned (zero-padded) input width
NB_ACTIONS = 4       # HIVPatient action_space.n
HIDDEN = 512
NOUT_PAD = 128       # lane-dense padded width of the final layer
NUM_MID = 4          # fc2..fc5


def dqn_kernel(x_ref, w1_ref, wmid_ref, w7_ref, bias_ref, o_ref, h_ref):
    """Grid = (batch_tiles, NUM_MID).

    The inner ("arbitrary") axis walks the four 512x512 hidden layers so the
    l-th layer's compute overlaps the BlockSpec DMA of layer (l+1)'s weights.
    fc1 runs at l == 0, fc7 at the last l.  The activation lives in a bf16
    VMEM scratch that persists across the layer axis.
    """
    l = pl.program_id(1)
    biases = bias_ref[...]                                   # (8, HIDDEN) f32

    # ---- fc1, full f32 (input fidelity; K is tiny so cost is negligible).
    @pl.when(l == 0)
    def _():
        h0 = jnp.dot(x_ref[...], w1_ref[...],
                     preferred_element_type=jnp.float32)
        h0 = jnp.maximum(h0 + biases[0:1, :], 0.0)
        h_ref[...] = h0.astype(jnp.bfloat16)

    # ---- middle layer l (fc2..fc5): bf16 matmul, f32 accumulate + bias + ReLU.
    # Select bias row (l + 1) without dynamic slicing: masked sublane reduce.
    row_ids = lax.broadcasted_iota(jnp.int32, (8, 1), 0)
    b_mid = jnp.sum(jnp.where(row_ids == l + 1, biases, 0.0),
                    axis=0, keepdims=True)                   # (1, HIDDEN)
    acc = jnp.dot(h_ref[...], wmid_ref[0],
                  preferred_element_type=jnp.float32)
    h_ref[...] = jnp.maximum(acc + b_mid, 0.0).astype(jnp.bfloat16)

    # ---- fc7 (no ReLU), written to the lane-dense 128-wide padded output.
    @pl.when(l == pl.num_programs(1) - 1)
    def _():
        out = jnp.dot(h_ref[...], w7_ref[...],
                      preferred_element_type=jnp.float32)
        o_ref[...] = (out + biases[5:6, :NOUT_PAD]).astype(o_ref.dtype)


def _round_up(x, m):
    return ((x + m - 1) // m) * m


def pick_tile_b(batch):
    """>=2 batch tiles whenever batch > 128 (so v7x's two TensorCores both get
    work from the "parallel" batch axis), while growing the tile up to 1024
    rows for large batches to amortize per-step overhead and feed the MXU."""
    half = -(-batch // 2)                      # ceil(batch / 2)
    return max(128, min(1024, _round_up(half, 128)))


@jax.jit
def dqn_forward(x, w1, w_mid, w7, bias_pack):
    """x: [B, STATE_DIM] f32.  w1: [STATE_PAD, HIDDEN] f32 (rows 6..7 zero).
    w_mid: [4, HIDDEN, HIDDEN] bf16 (fc2..fc5).  w7: [HIDDEN, NOUT_PAD] bf16
    (cols 4..127 zero).  bias_pack: [8, HIDDEN] f32.
    Returns [B, NB_ACTIONS] f32."""
    B = x.shape[0]
    tile_b = pick_tile_b(B)
    b_pad = _round_up(B, tile_b)
    x = jnp.pad(x, ((0, b_pad - B), (0, STATE_PAD - x.shape[1])))
    grid = (b_pad // tile_b, NUM_MID)

    const = lambda b, l: (0, 0)       # fetched once, VMEM-resident afterwards
    out = pl.pallas_call(
        dqn_kernel,
        out_shape=jax.ShapeDtypeStruct((b_pad, NOUT_PAD), jnp.float32),
        grid=grid,
        in_specs=[
            pl.BlockSpec((tile_b, STATE_PAD), lambda b, l: (b, 0)),   # x tile
            pl.BlockSpec((STATE_PAD, HIDDEN), const),                 # w1 (f32)
            pl.BlockSpec((1, HIDDEN, HIDDEN), lambda b, l: (l, 0, 0)),  # w2..w5
            pl.BlockSpec((HIDDEN, NOUT_PAD), const),                  # w7
            pl.BlockSpec((8, HIDDEN), const),                         # biases
        ],
        out_specs=pl.BlockSpec((tile_b, NOUT_PAD), lambda b, l: (b, 0)),
        scratch_shapes=[pltpu.VMEM((tile_b, HIDDEN), jnp.bfloat16)],
        compiler_params=pltpu.CompilerParams(
            dimension_semantics=("parallel", "arbitrary")),
    )(x, w1, w_mid, w7, bias_pack)
    return out[:B, :NB_ACTIONS]


def init_linear(key, fan_in, fan_out):
    """PyTorch nn.Linear default init: U(-1/sqrt(fan_in), 1/sqrt(fan_in)).
    Weight returned as [fan_in, fan_out] (already transposed)."""
    k = 1.0 / math.sqrt(fan_in)
    kw, kb = jax.random.split(key)
    w = jax.random.uniform(kw, (fan_in, fan_out), jnp.float32, minval=-k, maxval=k)
    b = jax.random.uniform(kb, (fan_out,), jnp.float32, minval=-k, maxval=k)
    return w, b


def make_params(key):
    """Kernel params + the original f32 params for the fidelity reference."""
    keys = jax.random.split(key, 6)

    w1_f32, b1 = init_linear(keys[0], STATE_DIM, HIDDEN)
    w1 = jnp.pad(w1_f32, ((0, STATE_PAD - STATE_DIM), (0, 0)))   # stays f32

    mid_f32, mid_b = [], []
    for i in range(NUM_MID):
        w, b = init_linear(keys[1 + i], HIDDEN, HIDDEN)
        mid_f32.append(w)
        mid_b.append(b)
    w_mid = jnp.stack(mid_f32).astype(jnp.bfloat16)              # (4,512,512)

    w7_f32, b7 = init_linear(keys[5], HIDDEN, NB_ACTIONS)
    w7 = jnp.pad(w7_f32, ((0, 0), (0, NOUT_PAD - NB_ACTIONS))).astype(jnp.bfloat16)

    bias_rows = [b1] + mid_b + [jnp.pad(b7, (0, HIDDEN - NB_ACTIONS))]
    bias_rows += [jnp.zeros((HIDDEN,), jnp.float32)] * (8 - len(bias_rows))
    bias_pack = jnp.stack(bias_rows).astype(jnp.float32)         # (8, 512)

    kernel_params = (w1, w_mid, w7, bias_pack)
    ref_params = (w1_f32, mid_f32, w7_f32, (b1, mid_b, b7))
    return kernel_params, ref_params


def reference_forward_matched(x, w1, w_mid, w7, bias_pack):
    """Pure-JAX reference with the SAME precision choices as the kernel."""
    h = jnp.dot(x, w1[:STATE_DIM], preferred_element_type=jnp.float32)
    h = jnp.maximum(h + bias_pack[0], 0.0).astype(jnp.bfloat16)
    for i in range(NUM_MID):
        acc = jnp.dot(h, w_mid[i], preferred_element_type=jnp.float32)
        h = jnp.maximum(acc + bias_pack[1 + i], 0.0).astype(jnp.bfloat16)
    out = jnp.dot(h, w7, preferred_element_type=jnp.float32) + bias_pack[5, :NOUT_PAD]
    return out[:, :NB_ACTIONS]


def reference_forward_f32(x, ref_params):
    """Full-f32 reference == the PyTorch DQN forward (fidelity check)."""
    w1, mids, w7, (b1, mid_b, b7) = ref_params
    hp = jax.lax.Precision.HIGHEST
    h = jnp.maximum(jnp.dot(x, w1, precision=hp) + b1, 0.0)
    for w, b in zip(mids, mid_b):
        h = jnp.maximum(jnp.dot(h, w, precision=hp) + b, 0.0)
    return jnp.dot(h, w7, precision=hp) + b7


if __name__ == "__main__":
    key = jax.random.PRNGKey(0)
    k_params, k_x = jax.random.split(key)

    params, ref_params = make_params(k_params)

    batch = 200   # DQN max_episode_steps; not a tile multiple -> 2 tiles + padding
    x = jax.random.normal(k_x, (batch, STATE_DIM), jnp.float32)

    out = dqn_forward(x, *params)
    jax.block_until_ready(out)
    assert out.shape == (batch, NB_ACTIONS)

    # (a) precision-matched reference (bf16 weights/activations, f32 accumulate).
    ref_bf16 = reference_forward_matched(x, *params)
    err_bf16 = float(jnp.max(jnp.abs(out - ref_bf16)))
    assert jnp.allclose(out, ref_bf16, atol=2e-2, rtol=2e-2), err_bf16

    # (b) full-f32 reference == original PyTorch DQN, explicit fidelity tolerance.
    ref_f32 = reference_forward_f32(x, ref_params)
    err_f32 = float(jnp.max(jnp.abs(out - ref_f32)))
    assert jnp.allclose(out, ref_f32, atol=5e-2, rtol=5e-2), err_f32

    print("KERNEL_OK")
</pallas_src>

<mosaic_0001>
module attributes {stable_mosaic.version = 11 : i64} {
  func.func @dqn_kernel(%arg0: i32, %arg1: i32, %arg2: memref<128x8xf32, #tpu.memory_space<vmem>>, %arg3: memref<8x512xf32, #tpu.memory_space<vmem>>, %arg4: memref<1x512x512xbf16, #tpu.memory_space<vmem>>, %arg5: memref<512x128xbf16, #tpu.memory_space<vmem>>, %arg6: memref<8x512xf32, #tpu.memory_space<vmem>>, %arg7: memref<128x128xf32, #tpu.memory_space<vmem>>, %arg8: memref<128x512xbf16, #tpu.memory_space<vmem>>) attributes {dimension_semantics = [#tpu.dimension_semantics<parallel>, #tpu.dimension_semantics<arbitrary>], iteration_bounds = array<i64: 2, 4>, scalar_prefetch = 0 : i64, scratch_operands = 1 : i64, tpu.core_type = #tpu.core_type<tc>, window_params = [{transform_indices = @transform_0, window_bounds = array<i64: 128, 8>}, {pipeline_mode = #tpu.pipeline_mode<synchronous>, transform_indices = @transform_1, window_bounds = array<i64: 8, 512>}, {transform_indices = @transform_2, window_bounds = array<i64: 1, 512, 512>}, {pipeline_mode = #tpu.pipeline_mode<synchronous>, transform_indices = @transform_3, window_bounds = array<i64: 512, 128>}, {pipeline_mode = #tpu.pipeline_mode<synchronous>, transform_indices = @transform_4, window_bounds = array<i64: 8, 512>}, {transform_indices = @transform_5, window_bounds = array<i64: 128, 128>}]} {
    %c0 = arith.constant 0 : index
    %c0_0 = arith.constant 0 : index
    %0 = vector.load %arg6[%c0, %c0_0] : memref<8x512xf32, #tpu.memory_space<vmem>>, vector<8x512xf32>
    %c0_i32 = arith.constant 0 : i32
    %1 = arith.cmpi eq, %arg1, %c0_i32 : i32
    %2 = arith.extui %1 : i1 to i32
    %c0_i32_1 = arith.constant 0 : i32
    %3 = arith.cmpi ne, %2, %c0_i32_1 : i32
    scf.if %3 {
      %c0_13 = arith.constant 0 : index
      %c0_14 = arith.constant 0 : index
      %27 = vector.load %arg2[%c0_13, %c0_14] : memref<128x8xf32, #tpu.memory_space<vmem>>, vector<128x8xf32>
      %c0_15 = arith.constant 0 : index
      %c0_16 = arith.constant 0 : index
      %28 = vector.load %arg3[%c0_15, %c0_16] : memref<8x512xf32, #tpu.memory_space<vmem>>, vector<8x512xf32>
      %cst_17 = arith.constant dense<0.000000e+00> : vector<128x512xf32>
      %29 = tpu.matmul %27, %28, %cst_17 {dimension_numbers = #tpu.dot_dimension_numbers<[1], [0], [0], [1], [0, 0, 1, 1], [], []>} : vector<128x8xf32>, vector<8x512xf32>, vector<128x512xf32> -> vector<128x512xf32>
      %30 = vector.extract_strided_slice %0 {offsets = [0, 0], sizes = [1, 512], strides = [1, 1]} : vector<8x512xf32> to vector<1x512xf32>
      %31 = vector.broadcast %30 : vector<1x512xf32> to vector<128x512xf32>
      %32 = arith.addf %29, %31 : vector<128x512xf32>
      %cst_18 = arith.constant 0.000000e+00 : f32
      %33 = vector.broadcast %cst_18 : f32 to vector<128x512xf32>
      %34 = arith.maximumf %32, %33 : vector<128x512xf32>
      %35 = arith.truncf %34 : vector<128x512xf32> to vector<128x512xbf16>
      %c0_19 = arith.constant 0 : index
      %c0_20 = arith.constant 0 : index
      %36 = vector.load %arg8[%c0_19, %c0_20] : memref<128x512xbf16, #tpu.memory_space<vmem>>, vector<128x512xbf16>
      tpu.vector_store %arg8[%c0_19, %c0_20], %35 {strides = array<i32>} : memref<128x512xbf16, #tpu.memory_space<vmem>>, vector<128x512xbf16>,
    } else {
    }
    %4 = tpu.iota {dimensions = array<i32: 0>} : vector<8x1xi32>
    %c1_i32 = arith.constant 1 : i32
    %5 = arith.addi %arg1, %c1_i32 : i32
    %6 = vector.broadcast %5 : i32 to vector<8x1xi32>
    %7 = arith.cmpi eq, %4, %6 : vector<8x1xi32>
    %cst = arith.constant 0.000000e+00 : f32
    %8 = vector.shape_cast %7 : vector<8x1xi1> to vector<8x1xi1>
    %9 = vector.broadcast %8 : vector<8x1xi1> to vector<8x512xi1>
    %10 = vector.broadcast %cst : f32 to vector<8x512xf32>
    %11 = arith.select %9, %0, %10 : vector<8x512xi1>, vector<8x512xf32>
    %cst_2 = arith.constant dense<0.000000e+00> : vector<512xf32>
    %12 = vector.multi_reduction <add>, %11, %cst_2 [0] : vector<8x512xf32> to vector<512xf32>
    %13 = vector.shape_cast %12 : vector<512xf32> to vector<1x512xf32>
    %c0_3 = arith.constant 0 : index
    %c0_4 = arith.constant 0 : index
    %14 = vector.load %arg8[%c0_3, %c0_4] : memref<128x512xbf16, #tpu.memory_space<vmem>>, vector<128x512xbf16>
    %c0_5 = arith.constant 0 : index
    %c0_6 = arith.constant 0 : index
    %c0_7 = arith.constant 0 : index
    %15 = vector.load %arg4[%c0_5, %c0_6, %c0_7] : memref<1x512x512xbf16, #tpu.memory_space<vmem>>, vector<1x512x512xbf16>
    %16 = vector.shape_cast %15 : vector<1x512x512xbf16> to vector<512x512xbf16>
    %cst_8 = arith.constant dense<0.000000e+00> : vector<128x512xf32>
    %17 = tpu.matmul %14, %16, %cst_8 {dimension_numbers = #tpu.dot_dimension_numbers<[1], [0], [0], [1], [0, 0, 1, 1], [], []>} : vector<128x512xbf16>, vector<512x512xbf16>, vector<128x512xf32> -> vector<128x512xf32>
    %18 = vector.broadcast %13 : vector<1x512xf32> to vector<128x512xf32>
    %19 = arith.addf %17, %18 : vector<128x512xf32>
    %cst_9 = arith.constant 0.000000e+00 : f32
    %20 = vector.broadcast %cst_9 : f32 to vector<128x512xf32>
    %21 = arith.maximumf %19, %20 : vector<128x512xf32>
    %22 = arith.truncf %21 : vector<128x512xf32> to vector<128x512xbf16>
    %c0_10 = arith.constant 0 : index
    %c0_11 = arith.constant 0 : index
    %23 = vector.load %arg8[%c0_10, %c0_11] : memref<128x512xbf16, #tpu.memory_space<vmem>>, vector<128x512xbf16>
    tpu.vector_store %arg8[%c0_10, %c0_11], %22 {strides = array<i32>} : memref<128x512xbf16, #tpu.memory_space<vmem>>, vector<128x512xbf16>,
    %c3_i32 = arith.constant 3 : i32
    %24 = arith.cmpi eq, %arg1, %c3_i32 : i32
    %25 = arith.extui %24 : i1 to i32
    %c0_i32_12 = arith.constant 0 : i32
    %26 = arith.cmpi ne, %25, %c0_i32_12 : i32
    scf.if %26 {
      %c0_13 = arith.constant 0 : index
      %c0_14 = arith.constant 0 : index
      %27 = vector.load %arg8[%c0_13, %c0_14] : memref<128x512xbf16, #tpu.memory_space<vmem>>, vector<128x512xbf16>
      %c0_15 = arith.constant 0 : index
      %c0_16 = arith.constant 0 : index
      %28 = vector.load %arg5[%c0_15, %c0_16] : memref<512x128xbf16, #tpu.memory_space<vmem>>, vector<512x128xbf16>
      %cst_17 = arith.constant dense<0.000000e+00> : vector<128x128xf32>
      %29 = tpu.matmul %27, %28, %cst_17 {dimension_numbers = #tpu.dot_dimension_numbers<[1], [0], [0], [1], [0, 0, 1, 1], [], []>} : vector<128x512xbf16>, vector<512x128xbf16>, vector<128x128xf32> -> vector<128x128xf32>
      %30 = vector.extract_strided_slice %0 {offsets = [5, 0], sizes = [1, 128], strides = [1, 1]} : vector<8x512xf32> to vector<1x128xf32>
      %31 = vector.broadcast %30 : vector<1x128xf32> to vector<128x128xf32>
      %32 = arith.addf %29, %31 : vector<128x128xf32>
      %c0_18 = arith.constant 0 : index
      %c0_19 = arith.constant 0 : index
      %33 = vector.load %arg7[%c0_18, %c0_19] : memref<128x128xf32, #tpu.memory_space<vmem>>, vector<128x128xf32>
      tpu.vector_store %arg7[%c0_18, %c0_19], %32 {strides = array<i32>} : memref<128x128xf32, #tpu.memory_space<vmem>>, vector<128x128xf32>,
    } else {
    }
    return
  }
  func.func @transform_0(%arg0: i32, %arg1: i32) -> (i32, i32) {
    %c0_i32 = arith.constant 0 : i32
    %c0_i32_0 = arith.constant 0 : i32
    return %arg0, %c0_i32 : i32, i32
  }
  func.func @transform_1(%arg0: i32, %arg1: i32) -> (i32, i32) {
    %c0_i32 = arith.constant 0 : i32
    %c0_i32_0 = arith.constant 0 : i32
    %c0_i32_1 = arith.constant 0 : i32
    return %c0_i32, %c0_i32_0 : i32, i32
  }
  func.func @transform_2(%arg0: i32, %arg1: i32) -> (i32, i32, i32) {
    %c0_i32 = arith.constant 0 : i32
    %c0_i32_0 = arith.constant 0 : i32
    %c0_i32_1 = arith.constant 0 : i32
    return %arg1, %c0_i32, %c0_i32_0 : i32, i32, i32
  }
  func.func @transform_3(%arg0: i32, %arg1: i32) -> (i32, i32) {
    %c0_i32 = arith.constant 0 : i32
    %c0_i32_0 = arith.constant 0 : i32
    %c0_i32_1 = arith.constant 0 : i32
    return %c0_i32, %c0_i32_0 : i32, i32
  }
  func.func @transform_4(%arg0: i32, %arg1: i32) -> (i32, i32) {
    %c0_i32 = arith.constant 0 : i32
    %c0_i32_0 = arith.constant 0 : i32
    %c0_i32_1 = arith.constant 0 : i32
    return %c0_i32, %c0_i32_0 : i32, i32
  }
  func.func @transform_5(%arg0: i32, %arg1: i32) -> (i32, i32) {
    %c0_i32 = arith.constant 0 : i32
    %c0_i32_0 = arith.constant 0 : i32
    return %arg0, %c0_i32 : i32, i32
  }
}

</mosaic_0001>

<llo_original>
// kernel: dqn_forward.1
$region0: #{dqn_forward.1}
  #allocation0 [shape = 'u32[]', space=smem, size = 0x4, offset = 0x4, fixed_abs, tag = 'smem constant byte address 0x4 - core index']
  #allocation1 [shape = 'u32[144,128]{1,0:T(1,128)}', space=vmem, size = 0x12000, scoped, tag = 'internal scratch']
  #allocation2 [shape = 'bf16[128,512]{1,0:T(8,128)(2,1)}', space=vmem, size = 0x20000, scoped, tag = 'scratch operand']
  %s0 = inlined_call_operand.vmem [shape: f32[256,8], index: 0, kind: input, shape index: {}]
  %s1 = inlined_call_operand.hbm [shape: f32[8,512], index: 1, kind: input, shape index: {}]
  %s2 = inlined_call_operand.hbm [shape: bf16[4,512,512], index: 2, kind: input, shape index: {}]
  %s3 = inlined_call_operand.hbm [shape: bf16[512,128], index: 3, kind: input, shape index: {}]
  %s4 = inlined_call_operand.hbm [shape: f32[8,512], index: 4, kind: input, shape index: {}]
  %s5 = inlined_call_operand.vmem [shape: f32[256,128], index: 5, kind: output, shape index: {}]
  %s6 = sld [smem:[#allocation0]]
  $region77: #{dqn_forward.1} parent=0
    _
  %s8 = ssub.s32 1, %s6
  %s9 = scalar_select 0, %s8, %s6
  $region1: #{dqn_forward.1} parent=0
    #allocation3 [shape = 'u8[16384]{0}', space=vmem, size = 0x4000, scoped, tag = 'input window, operand 1, single buffered']
    #allocation4 [shape = 's32[2]{0}', space=sflag, size = 0x8, scoped, tag = 'scoped memory for dqn_forward.1']
    #allocation5 [shape = 'u8[1048576]{0}', space=vmem, size = 0x100000, scoped, tag = 'input window, operand 2']
    #allocation6 [shape = 's32[2]{0}', space=sflag, size = 0x8, scoped, tag = 'scoped memory for dqn_forward.1']
    #allocation7 [shape = 'u8[131072]{0}', space=vmem, size = 0x20000, scoped, tag = 'input window, operand 3, single buffered']
    #allocation8 [shape = 'u8[16384]{0}', space=vmem, size = 0x4000, scoped, tag = 'input window, operand 4, single buffered']
    #allocation9 [shape = 's32[1]{0}', space=sflag, size = 0x4, scoped, tag = 'scoped memory for dqn_forward.1']
    %10 = vsyncpa [#allocation4], 0
    %11 = vsyncpa [#allocation6], 0
    %s12 = scalar_lea.sflag [#allocation6], 1
    %13 = vsyncpa %s12, 0
    %14 = vsyncpa [#allocation9], 0
    loop: start=0, step=1, limit=10
    $region2: #{dqn_forward.1} parent=1 // loop_pre_header
      _
    $region3: #{dqn_forward.1} parent=1 // loop_header
      %s16 = sphi 0, %s20
      %p17 = scmp.ge.s32.totalorder %s16, 10
      %s23 = sphi 0, %s35
      %s24 = sphi 0, %s31
      %s25 = sphi 0, %s23
      %s26 = sphi 0, %s24
      %s27 = sphi 0, %s25
      %s28 = sphi 0, %s26
      %s38 = sphi 0, %s40
      %s41 = sphi 0, %s38
      %s42 = sphi 0, %s41
      %s58 = sphi 0, %s42
      %s62 = sphi 0, %s62
      %s64 = sphi 0, %s62
      %s65 = sphi 0, %s64
      %s79 = sphi 0, %s65
      %s85 = sphi 0, %s87
      %s88 = sphi 0, %s85
      %s89 = sphi 0, %s88
      %s105 = sphi 0, %s89
      %s109 = sphi 0, %s109
      %s111 = sphi 0, %s109
      %s112 = sphi 0, %s111
      %s126 = sphi 0, %s112
      %s130 = sphi 0, %s130
      %s132 = sphi 0, %s130
      %s133 = sphi 0, %s132
      %s147 = sphi 0, %s133
      %s153 = sphi 0, %s155
      %s156 = sphi 0, %s153
      %s157 = sphi 0, %s156
      %s173 = sphi 0, %s157
    $region4: #{dqn_forward.1} parent=1 // loop_header_branch
      %19 = sbr.rel (%p17) target = $region8
    $region5: #{dqn_forward.1} parent=1 // loop_body
      %s21 = ssub.s32 %s16, 1
      %s22 = ssub.s32 %s16, 2
      %s29 = sadd.s32 1, %s24
      %p30 = scmp.ge.s32.totalorder %s29, 4
      %s31 = scalar_select %p30, 0, %s29
      %s32 = sadd.s32 1, %s23
      %s33 = scalar_select %p30, %s32, %s23
      %p34 = scmp.ge.s32.totalorder %s33, 2
      %s35 = scalar_select %p34, 0, %s33
      %s36 = ssub.s32 %s23, %s35
      %p37 = scmp.eq.s32.totalorder %s36, 0
      %s39 = sadd.s32 %s38, 1
      %s40 = scalar_select %p37, %s38, %s39
      %p43 = pneg %p37
      %p44 = scmp.eq.s32.totalorder %s16, 7
      %p45 = por %p43, %p44
      %p46 = scmp.ne.s32.totalorder %s38, %s41
      %p47 = scmp.eq.s32.totalorder %s16, 0
      %p48 = por %p46, %p47
      %p49 = scmp.ne.s32.totalorder %s38, %s41
      %p50 = scmp.eq.s32.totalorder %s21, 7
      %p51 = por %p49, %p50
      %p52 = scmp.ne.s32.totalorder %s41, %s42
      %p53 = scmp.eq.s32.totalorder %s21, 0
      %p54 = por %p52, %p53
      %p55 = scmp.ne.s32.totalorder %s41, %s42
      %p56 = scmp.eq.s32.totalorder %s22, 7
      %p57 = por %p55, %p56
      %p59 = scmp.ne.s32.totalorder %s42, %s58
      %p60 = scmp.eq.s32.totalorder %s22, 0
      %p61 = por %p59, %p60
      %s63 = sadd.s32 %s62, 1
      %p66 = scmp.eq.s32.totalorder %s16, 7
      %p67 = scmp.ne.s32.totalorder %s62, %s64
      %p68 = scmp.eq.s32.totalorder %s16, 0
      %p69 = por %p67, %p68
      %p70 = scmp.ne.s32.totalorder %s62, %s64
      %p71 = scmp.eq.s32.totalorder %s21, 7
      %p72 = por %p70, %p71
      %p73 = scmp.ne.s32.totalorder %s64, %s65
      %p74 = scmp.eq.s32.totalorder %s21, 0
      %p75 = por %p73, %p74
      %p76 = scmp.ne.s32.totalorder %s64, %s65
      %p77 = scmp.eq.s32.totalorder %s22, 7
      %p78 = por %p76, %p77
      %p80 = scmp.ne.s32.totalorder %s65, %s79
      %p81 = scmp.eq.s32.totalorder %s22, 0
      %p82 = por %p80, %p81
      %s83 = ssub.s32 %s24, %s31
      %p84 = scmp.eq.s32.totalorder %s83, 0
      %s86 = sadd.s32 %s85, 1
      %s87 = scalar_select %p84, %s85, %s86
      %p90 = pneg %p84
      %p91 = scmp.eq.s32.totalorder %s16, 7
      %p92 = por %p90, %p91
      %p93 = scmp.ne.s32.totalorder %s85, %s88
      %p94 = scmp.eq.s32.totalorder %s16, 0
      %p95 = por %p93, %p94
      %p96 = scmp.ne.s32.totalorder %s85, %s88
      %p97 = scmp.eq.s32.totalorder %s21, 7
      %p98 = por %p96, %p97
      %p99 = scmp.ne.s32.totalorder %s88, %s89
      %p100 = scmp.eq.s32.totalorder %s21, 0
      %p101 = por %p99, %p100
      %p102 = scmp.ne.s32.totalorder %s88, %s89
      %p103 = scmp.eq.s32.totalorder %s22, 7
      %p104 = por %p102, %p103
      %p106 = scmp.ne.s32.totalorder %s89, %s105
      %p107 = scmp.eq.s32.totalorder %s22, 0
      %p108 = por %p106, %p107
      %s110 = sadd.s32 %s109, 1
      %p113 = scmp.eq.s32.totalorder %s16, 7
      %p114 = scmp.ne.s32.totalorder %s109, %s111
      %p115 = scmp.eq.s32.totalorder %s16, 0
      %p116 = por %p114, %p115
      %p117 = scmp.ne.s32.totalorder %s109, %s111
      %p118 = scmp.eq.s32.totalorder %s21, 7
      %p119 = por %p117, %p118
      %p120 = scmp.ne.s32.totalorder %s111, %s112
      %p121 = scmp.eq.s32.totalorder %s21, 0
      %p122 = por %p120, %p121
      %p123 = scmp.ne.s32.totalorder %s111, %s112
      %p124 = scmp.eq.s32.totalorder %s22, 7
      %p125 = por %p123, %p124
      %p127 = scmp.ne.s32.totalorder %s112, %s126
      %p128 = scmp.eq.s32.totalorder %s22, 0
      %p129 = por %p127, %p128
      %s131 = sadd.s32 %s130, 1
      %p134 = scmp.eq.s32.totalorder %s16, 7
      %p135 = scmp.ne.s32.totalorder %s130, %s132
      %p136 = scmp.eq.s32.totalorder %s16, 0
      %p137 = por %p135, %p136
      %p138 = scmp.ne.s32.totalorder %s130, %s132
      %p139 = scmp.eq.s32.totalorder %s21, 7
      %p140 = por %p138, %p139
      %p141 = scmp.ne.s32.totalorder %s132, %s133
      %p142 = scmp.eq.s32.totalorder %s21, 0
      %p143 = por %p141, %p142
      %p144 = scmp.ne.s32.totalorder %s132, %s133
      %p145 = scmp.eq.s32.totalorder %s22, 7
      %p146 = por %p144, %p145
      %p148 = scmp.ne.s32.totalorder %s133, %s147
      %p149 = scmp.eq.s32.totalorder %s22, 0
      %p150 = por %p148, %p149
      %s151 = ssub.s32 %s23, %s35
      %p152 = scmp.eq.s32.totalorder %s151, 0
      %s154 = sadd.s32 %s153, 1
      %s155 = scalar_select %p152, %s153, %s154
      %p158 = pneg %p152
      %p159 = scmp.eq.s32.totalorder %s16, 7
      %p160 = por %p158, %p159
      %p161 = scmp.ne.s32.totalorder %s153, %s156
      %p162 = scmp.eq.s32.totalorder %s16, 0
      %p163 = por %p161, %p162
      %p164 = scmp.ne.s32.totalorder %s153, %s156
      %p165 = scmp.eq.s32.totalorder %s21, 7
      %p166 = por %p164, %p165
      %p167 = scmp.ne.s32.totalorder %s156, %s157
      %p168 = scmp.eq.s32.totalorder %s21, 0
      %p169 = por %p167, %p168
      %p170 = scmp.ne.s32.totalorder %s156, %s157
      %p171 = scmp.eq.s32.totalorder %s22, 7
      %p172 = por %p170, %p171
      %p174 = scmp.ne.s32.totalorder %s157, %s173
      %p175 = scmp.eq.s32.totalorder %s22, 0
      %p176 = por %p174, %p175
      %p177 = scmp.le.s32.totalorder 1, %s16
      %p178 = scmp.lt.s32.totalorder %s16, 9
      %p179 = pnand %p177, %p178
      %p180 = pneg %p179
      // Predicated region
      $region9: #{dqn_forward.1} parent=5 // pred_check
        _
      $region10: #{dqn_forward.1} parent=5 // pred_check_branch
        %182 = sbr.rel (%p179) target = $region12
      $region11: #{dqn_forward.1} parent=5 // pred_region
        %s183 = ssub.s32 %s16, 1
        // Predicated region
        $region13: #{dqn_forward.1} parent=11 // pred_check
          %p184 = pneg %p75
        $region14: #{dqn_forward.1} parent=11 // pred_check_branch
          %186 = sbr.rel (%p184) target = $region16
        $region15: #{dqn_forward.1} parent=11 // pred_region
          %s188 = ssub.s32 512, 512
          %189 = vsyncadd [#allocation4], %s188
          %s191 = sshll.u32 [#allocation3], 4
          %s192 = int_to_ptr.vmem [resolvable:$true] %s191
          %194 = dma.hbm_to_vmem [thread:$0]  %s1, 512, %s192, [#allocation4]
        $region16: #{dqn_forward.1} parent=11 // pred_fallthru
          _
        // Predicated region
        $region17: #{dqn_forward.1} parent=11 // pred_check
          %p195 = pneg %p122
        $region18: #{dqn_forward.1} parent=11 // pred_check_branch
          %197 = sbr.rel (%p195) target = $region20
        $region19: #{dqn_forward.1} parent=11 // pred_region
          %s199 = ssub.s32 4096, 4096
          %200 = vsyncadd [#allocation6], %s199
          %s201 = sshll.u32 [#allocation7], 4
          %s202 = int_to_ptr.vmem [resolvable:$true] %s201
          %207 = dma.hbm_to_vmem [thread:$0]  %s3, 4096, %s202, [#allocation6], 64, 64, 4
        $region20: #{dqn_forward.1} parent=11 // pred_fallthru
          _
        // Predicated region
        $region21: #{dqn_forward.1} parent=11 // pred_check
          %p208 = pneg %p143
        $region22: #{dqn_forward.1} parent=11 // pred_check_branch
          %210 = sbr.rel (%p208) target = $region24
        $region23: #{dqn_forward.1} parent=11 // pred_region
          %s212 = ssub.s32 512, 512
          %213 = vsyncadd [#allocation9], %s212
          %s215 = sshll.u32 [#allocation8], 4
          %s216 = int_to_ptr.vmem [resolvable:$true] %s215
          %218 = dma.hbm_to_vmem [thread:$0]  %s4, 512, %s216, [#allocation9]
        $region24: #{dqn_forward.1} parent=11 // pred_fallthru
          _
      $region12: #{dqn_forward.1} parent=5 // pred_fallthru
        _
      %p219 = scmp.lt.s32.totalorder %s16, 8
      // Predicated region
      $region25: #{dqn_forward.1} parent=5 // pred_check
        %p220 = pneg %p219
      $region26: #{dqn_forward.1} parent=5 // pred_check_branch
        %222 = sbr.rel (%p220) target = $region28
      $region27: #{dqn_forward.1} parent=5 // pred_region
        // Predicated region
        $region29: #{dqn_forward.1} parent=27 // pred_check
          %p223 = pneg %p48
        $region30: #{dqn_forward.1} parent=27 // pred_check_branch
          %225 = sbr.rel (%p223) target = $region32
        $region31: #{dqn_forward.1} parent=27 // pred_region
          %s226 = smul.u32 16, %s23
          %p227 = scmp.lt.s32.totalorder %s226, 31
          %s228 = scalar_select %p227, %s226, 31
          %s229 = smul.addr %s228, 8
          %s230 = scalar_lea.vmem %s0, %s229
          %s231 = smul.u32 16, %s23
        $region32: #{dqn_forward.1} parent=27 // pred_fallthru
          _
        // Predicated region
        $region33: #{dqn_forward.1} parent=27 // pred_check
          %p232 = pneg %p95
        $region34: #{dqn_forward.1} parent=27 // pred_check_branch
          %234 = sbr.rel (%p232) target = $region36
        $region35: #{dqn_forward.1} parent=27 // pred_region
          %s235 = sand.u32 %s16, 1
          %s236 = scalar_lea.sflag [#allocation6], %s235
          %s237 = sand.u32 %s85, 1
          %s238 = smul.addr %s237, 1024
          %s239 = scalar_lea.vmem [#allocation5], %s238
          %s241 = ssub.s32 16384, 16384
          %242 = vsyncadd %s236, %s241
          %s243 = smul.addr %s24, 256
          %s244 = smul.addr %s243, 64
          %s245 = scalar_lea.hbm %s2, %s244
          %s246 = sshll.u32 %s239, 4
          %s247 = int_to_ptr.vmem [resolvable:$true] %s246
          %252 = dma.hbm_to_vmem [thread:$0]  %s245, 16384, %s247, %s236, 256, 256, 16
        $region36: #{dqn_forward.1} parent=27 // pred_fallthru
          _
      $region28: #{dqn_forward.1} parent=5 // pred_fallthru
        _
      %p253 = scmp.le.s32.totalorder 1, %s16
      %p254 = scmp.lt.s32.totalorder %s16, 9
      %p255 = pnand %p253, %p254
      %p256 = pneg %p255
      // Predicated region
      $region37: #{dqn_forward.1} parent=5 // pred_check
        _
      $region38: #{dqn_forward.1} parent=5 // pred_check_branch
        %258 = sbr.rel (%p255) target = $region40
      $region39: #{dqn_forward.1} parent=5 // pred_region
        %s259 = ssub.s32 %s16, 1
        // Predicated region
        $region41: #{dqn_forward.1} parent=39 // pred_check
          %p260 = pneg %p75
        $region42: #{dqn_forward.1} parent=39 // pred_check_branch
          %262 = sbr.rel (%p260) target = $region44
        $region43: #{dqn_forward.1} parent=39 // pred_region
          %263 = dma.done [#allocation4], 512
        $region44: #{dqn_forward.1} parent=39 // pred_fallthru
          _
        %s264 = sand.u32 %s21, 1
        %s265 = scalar_lea.sflag [#allocation6], %s264
        %s266 = sand.u32 %s88, 1
        %s267 = smul.addr %s266, 1024
        %s268 = scalar_lea.vmem [#allocation5], %s267
        // Predicated region
        $region45: #{dqn_forward.1} parent=39 // pred_check
          %p269 = pneg %p101
        $region46: #{dqn_forward.1} parent=39 // pred_check_branch
          %271 = sbr.rel (%p269) target = $region48
        $region47: #{dqn_forward.1} parent=39 // pred_region
          %272 = dma.done %s265, 16384
        $region48: #{dqn_forward.1} parent=39 // pred_fallthru
          _
        // Predicated region
        $region49: #{dqn_forward.1} parent=39 // pred_check
          %p273 = pneg %p122
        $region50: #{dqn_forward.1} parent=39 // pred_check_branch
          %275 = sbr.rel (%p273) target = $region52
        $region51: #{dqn_forward.1} parent=39 // pred_region
          %276 = dma.done [#allocation6], 4096
        $region52: #{dqn_forward.1} parent=39 // pred_fallthru
          _
        // Predicated region
        $region53: #{dqn_forward.1} parent=39 // pred_check
          %p277 = pneg %p143
        $region54: #{dqn_forward.1} parent=39 // pred_check_branch
          %279 = sbr.rel (%p277) target = $region56
        $region55: #{dqn_forward.1} parent=39 // pred_region
          %280 = dma.done [#allocation9], 512
        $region56: #{dqn_forward.1} parent=39 // pred_fallthru
          _
        %s281 = smul.u32 16, %s25
        %p282 = scmp.lt.s32.totalorder %s281, 31
        %s283 = scalar_select %p282, %s281, 31
        %s284 = smul.addr %s283, 8
        %s285 = scalar_lea.vmem %s0, %s284
        %p286 = pneg %p54
        %p287 = pneg %p51
        %p288 = pneg %p75
        %p289 = pneg %p72
        %s290 = sand.u32 %s21, 1
        %s291 = scalar_lea.sflag [#allocation6], %s290
        %s292 = sand.u32 %s88, 1
        %s293 = smul.addr %s292, 1024
        %s294 = scalar_lea.vmem [#allocation5], %s293
        %p295 = pneg %p101
        %p296 = pneg %p98
        %p297 = pneg %p122
        %p298 = pneg %p119
        %p299 = pneg %p143
        %p300 = pneg %p140
        %p301 = pneg %p169
        %p302 = pneg %p166
        %s303 = smul.u32 16, %s25
        %p304 = scmp.lt.s32.totalorder %s303, 31
        %s305 = scalar_select %p304, %s303, 31
        %s306 = smul.addr %s305, 8
        %s307 = scalar_lea.vmem %s5, %s306
        %s308 = smul.u32 16, %s25
        %p309 = scmp.lt.s32.totalorder %s308, 31
        %s310 = scalar_select %p309, %s308, 31
        %s311 = smul.addr %s310, 8
        %s312 = scalar_lea.vmem %s0, %s311
        %s313 = smul.u32 16, %s25
        %s314 = smul.u32 16, %s25
        %p315 = scmp.lt.s32.totalorder %s314, 31
        %s316 = scalar_select %p315, %s314, 31
        %s317 = smul.addr %s316, 8
        %s318 = scalar_lea.vmem %s5, %s317
        %s319 = smul.u32 16, %s25
        %v321 = vld [vmem:[#allocation8] sm:$0xff]
        %v322 = vld [vmem:[#allocation8 + $0x8] sm:$0xff]
        %v323 = vld [vmem:[#allocation8 + $0x10] sm:$0xff]
        %v324 = vld [vmem:[#allocation8 + $0x18] sm:$0xff]
        %p325 = scmp.eq.s32.totalorder %s26, 0
        // Predicated region
        $region57: #{dqn_forward.1} parent=39 // pred_check
          %p326 = pneg %p325
        $region58: #{dqn_forward.1} parent=39 // pred_check_branch
          %328 = sbr.rel (%p326) target = $region60
        $region59: #{dqn_forward.1} parent=39 // pred_region
          %v329 = vld [vmem:[%s312] sm:$0xff]
          %v330 = vld [vmem:[%s312 + $0x8] sm:$0xff]
          %v331 = vld [vmem:[%s312 + $0x10] sm:$0xff]
          %v332 = vld [vmem:[%s312 + $0x18] sm:$0xff]
          %v333 = vld [vmem:[%s312 + $0x20] sm:$0xff]
          %v334 = vld [vmem:[%s312 + $0x28] sm:$0xff]
          %v335 = vld [vmem:[%s312 + $0x30] sm:$0xff]
          %v336 = vld [vmem:[%s312 + $0x38] sm:$0xff]
          %v337 = vld [vmem:[%s312 + $0x40] sm:$0xff]
          %v338 = vld [vmem:[%s312 + $0x48] sm:$0xff]
          %v339 = vld [vmem:[%s312 + $0x50] sm:$0xff]
          %v340 = vld [vmem:[%s312 + $0x58] sm:$0xff]
          %v341 = vld [vmem:[%s312 + $0x60] sm:$0xff]
          %v342 = vld [vmem:[%s312 + $0x68] sm:$0xff]
          %v343 = vld [vmem:[%s312 + $0x70] sm:$0xff]
          %v344 = vld [vmem:[%s312 + $0x78] sm:$0xff]
          %v345 = vld [vmem:[#allocation3] sm:$0xff]
          %v346 = vld [vmem:[#allocation3 + $0x8] sm:$0xff]
          %v347 = vld [vmem:[#allocation3 + $0x10] sm:$0xff]
          %v348 = vld [vmem:[#allocation3 + $0x18] sm:$0xff]
          %v349 = vlaneseq
          %v350 = vshrl.u32 %v349, 7
          %v351 = vsub.s32 0, %v350
          %v352 = vrot.slane %v321, %v351
          %v353 = vlaneseq
          %v354 = vshrl.u32 %v353, 7
          %v355 = vsub.s32 0, %v354
          %v356 = vrot.slane %v322, %v355
          %v357 = vlaneseq
          %v358 = vshrl.u32 %v357, 7
          %v359 = vsub.s32 0, %v358
          %v360 = vrot.slane %v323, %v359
          %v361 = vlaneseq
          %v362 = vshrl.u32 %v361, 7
          %v363 = vsub.s32 0, %v362
          %v364 = vrot.slane %v324, %v363
          %vm365 = vcmask 64512
          %v367 = vsel %vm365, %v329, 0
          %v370 = vsel %vm365, %v330, 0
          %v373 = vsel %vm365, %v331, 0
          %v376 = vsel %vm365, %v332, 0
          %v379 = vsel %vm365, %v333, 0
          %v382 = vsel %vm365, %v334, 0
          %v385 = vsel %vm365, %v335, 0
          %v388 = vsel %vm365, %v336, 0
          %v391 = vsel %vm365, %v337, 0
          %v394 = vsel %vm365, %v338, 0
          %v397 = vsel %vm365, %v339, 0
          %v400 = vsel %vm365, %v340, 0
          %v403 = vsel %vm365, %v341, 0
          %v406 = vsel %vm365, %v342, 0
          %v409 = vsel %vm365, %v343, 0
          %v412 = vsel %vm365, %v344, 0
          %414 = vmatprep.subr.mxu0 0.0
          %415 = vmatpush1.msra.mxu0 0.0
          %416 = vmatprep.subr.mxu0 0.0
          %417 = vmatpush1.msra.mxu0 0.0
          %418 = vmatprep.subr.mxu0 0.0
          %419 = vmatpush1.msra.mxu0 0.0
          %420 = vmatprep.subr.mxu0 0.0
          %421 = vmatpush1.msra.mxu0 0.0
          %422 = vmatprep.subr.mxu0 0.0
          %423 = vmatpush1.msra.mxu0 0.0
          %424 = vmatprep.subr.mxu0 0.0
          %425 = vmatpush1.msra.mxu0 0.0
          %426 = vmatprep.subr.mxu0 0.0
          %427 = vmatpush1.msra.mxu0 0.0
          %428 = vmatprep.subr.mxu0 0.0
          %429 = vmatpush1.msra.mxu0 0.0
          %430 = vmatprep.subr.mxu0 0.0
          %431 = vmatpush1.msra.mxu0 0.0
          %432 = vmatprep.subr.mxu0 0.0
          %433 = vmatpush1.msra.mxu0 0.0
          %434 = vmatprep.subr.mxu0 0.0
          %435 = vmatpush1.msra.mxu0 0.0
          %436 = vmatprep.subr.mxu0 0.0
          %437 = vmatpush1.msra.mxu0 0.0
          %438 = vmatprep.subr.mxu0 0.0
          %439 = vmatpush1.msra.mxu0 0.0
          %440 = vmatprep.subr.mxu0 0.0
          %441 = vmatpush1.msra.mxu0 0.0
          %442 = vmatprep.subr.mxu0 0.0
          %443 = vmatpush1.msra.mxu0 0.0
          %444 = vmatprep.subr.mxu0 %v346
          %445 = vmatpush1.msra.mxu0 %v345
          %446 = vmatprep.subr.mxu0 0.0
          %447 = vmatpush2.msra.mxu0 0.0
          %448 = vmatprep.subr.mxu0 0.0
          %449 = vmatpush2.msra.mxu0 0.0
          %450 = vmatprep.subr.mxu0 0.0
          %451 = vmatpush2.msra.mxu0 0.0
          %452 = vmatprep.subr.mxu0 0.0
          %453 = vmatpush2.msra.mxu0 0.0
          %454 = vmatprep.subr.mxu0 0.0
          %455 = vmatpush2.msra.mxu0 0.0
          %456 = vmatprep.subr.mxu0 0.0
          %457 = vmatpush2.msra.mxu0 0.0
          %458 = vmatprep.subr.mxu0 0.0
          %459 = vmatpush2.msra.mxu0 0.0
          %460 = vmatprep.subr.mxu0 0.0
          %461 = vmatpush2.msra.mxu0 0.0
          %462 = vmatprep.subr.mxu0 0.0
          %463 = vmatpush2.msra.mxu0 0.0
          %464 = vmatprep.subr.mxu0 0.0
          %465 = vmatpush2.msra.mxu0 0.0
          %466 = vmatprep.subr.mxu0 0.0
          %467 = vmatpush2.msra.mxu0 0.0
          %468 = vmatprep.subr.mxu0 0.0
          %469 = vmatpush2.msra.mxu0 0.0
          %470 = vmatprep.subr.mxu0 0.0
          %471 = vmatpush2.msra.mxu0 0.0
          %472 = vmatprep.subr.mxu0 0.0
          %473 = vmatpush2.msra.mxu0 0.0
          %474 = vmatprep.subr.mxu0 0.0
          %475 = vmatpush2.msra.mxu0 0.0
          %476 = vmatprep.subr.mxu0 0.0
          %477 = vmatpush2.msra.mxu0 0.0
          %478 = vmatprep.mubr.f32.mxu0 0.0
          %479 = vmatmul.mubr.f32.gmra.mxu0 %v367
          %v480 = vpop.f32.mrf.mxu0
          %v481 = vadd.f32 %v352, %v480
          %v482 = vpop.f32.mrf.mxu0
          %v483 = vadd.f32 %v356, %v482
          %484 = vmatprep.mubr.f32.mxu0 0.0
          %485 = vmatmul.mubr.f32.gmra.mxu0 %v370
          %v486 = vpop.f32.mrf.mxu0
          %v487 = vadd.f32 %v352, %v486
          %v488 = vpop.f32.mrf.mxu0
          %v489 = vadd.f32 %v356, %v488
          %490 = vmatprep.mubr.f32.mxu0 0.0
          %491 = vmatmul.mubr.f32.gmra.mxu0 %v373
          %v492 = vpop.f32.mrf.mxu0
          %v493 = vadd.f32 %v352, %v492
          %v494 = vpop.f32.mrf.mxu0
          %v495 = vadd.f32 %v356, %v494
          %496 = vmatprep.mubr.f32.mxu0 0.0
          %497 = vmatmul.mubr.f32.gmra.mxu0 %v376
          %v498 = vpop.f32.mrf.mxu0
          %v499 = vadd.f32 %v352, %v498
          %v500 = vpop.f32.mrf.mxu0
          %v501 = vadd.f32 %v356, %v500
          %502 = vmatprep.mubr.f32.mxu0 0.0
          %503 = vmatmul.mubr.f32.gmra.mxu0 %v379
          %v504 = vpop.f32.mrf.mxu0
          %v505 = vadd.f32 %v352, %v504
          %v506 = vpop.f32.mrf.mxu0
          %v507 = vadd.f32 %v356, %v506
          %508 = vmatprep.mubr.f32.mxu0 0.0
          %509 = vmatmul.mubr.f32.gmra.mxu0 %v382
          %v510 = vpop.f32.mrf.mxu0
          %v511 = vadd.f32 %v352, %v510
          %v512 = vpop.f32.mrf.mxu0
          %v513 = vadd.f32 %v356, %v512
          %514 = vmatprep.mubr.f32.mxu0 0.0
          %515 = vmatmul.mubr.f32.gmra.mxu0 %v385
          %v516 = vpop.f32.mrf.mxu0
          %v517 = vadd.f32 %v352, %v516
          %v518 = vpop.f32.mrf.mxu0
          %v519 = vadd.f32 %v356, %v518
          %520 = vmatprep.mubr.f32.mxu0 0.0
          %521 = vmatmul.mubr.f32.gmra.mxu0 %v388
          %v522 = vpop.f32.mrf.mxu0
          %v523 = vadd.f32 %v352, %v522
          %v524 = vpop.f32.mrf.mxu0
          %v525 = vadd.f32 %v356, %v524
          %526 = vmatprep.mubr.f32.mxu0 0.0
          %527 = vmatmul.mubr.f32.gmra.mxu0 %v391
          %v528 = vpop.f32.mrf.mxu0
          %v529 = vadd.f32 %v352, %v528
          %v530 = vpop.f32.mrf.mxu0
          %v531 = vadd.f32 %v356, %v530
          %532 = vmatprep.mubr.f32.mxu0 0.0
          %533 = vmatmul.mubr.f32.gmra.mxu0 %v394
          %v534 = vpop.f32.mrf.mxu0
          %v535 = vadd.f32 %v352, %v534
          %v536 = vpop.f32.mrf.mxu0
          %v537 = vadd.f32 %v356, %v536
          %538 = vmatprep.mubr.f32.mxu0 0.0
          %539 = vmatmul.mubr.f32.gmra.mxu0 %v397
          %v540 = vpop.f32.mrf.mxu0
          %v541 = vadd.f32 %v352, %v540
          %v542 = vpop.f32.mrf.mxu0
          %v543 = vadd.f32 %v356, %v542
          %544 = vmatprep.mubr.f32.mxu0 0.0
          %545 = vmatmul.mubr.f32.gmra.mxu0 %v400
          %v546 = vpop.f32.mrf.mxu0
          %v547 = vadd.f32 %v352, %v546
          %v548 = vpop.f32.mrf.mxu0
          %v549 = vadd.f32 %v356, %v548
          %550 = vmatprep.mubr.f32.mxu0 0.0
          %551 = vmatmul.mubr.f32.gmra.mxu0 %v403
          %v552 = vpop.f32.mrf.mxu0
          %v553 = vadd.f32 %v352, %v552
          %v554 = vpop.f32.mrf.mxu0
          %v555 = vadd.f32 %v356, %v554
          %556 = vmatprep.mubr.f32.mxu0 0.0
          %557 = vmatmul.mubr.f32.gmra.mxu0 %v406
          %v558 = vpop.f32.mrf.mxu0
          %v559 = vadd.f32 %v352, %v558
          %v560 = vpop.f32.mrf.mxu0
          %v561 = vadd.f32 %v356, %v560
          %562 = vmatprep.mubr.f32.mxu0 0.0
          %563 = vmatmul.mubr.f32.gmra.mxu0 %v409
          %v564 = vpop.f32.mrf.mxu0
          %v565 = vadd.f32 %v352, %v564
          %v566 = vpop.f32.mrf.mxu0
          %v567 = vadd.f32 %v356, %v566
          %568 = vmatprep.mubr.f32.mxu0 0.0
          %569 = vmatmul.mubr.f32.gmra.mxu0 %v412
          %v570 = vpop.f32.mrf.mxu0
          %v571 = vadd.f32 %v352, %v570
          %v572 = vpop.f32.mrf.mxu0
          %v573 = vadd.f32 %v356, %v572
          %574 = vdwg.mxu0
          %575 = vmatprep.subr.mxu0 0.0
          %576 = vmatpush1.msra.mxu0 0.0
          %577 = vmatprep.subr.mxu0 0.0
          %578 = vmatpush1.msra.mxu0 0.0
          %579 = vmatprep.subr.mxu0 0.0
          %580 = vmatpush1.msra.mxu0 0.0
          %581 = vmatprep.subr.mxu0 0.0
          %582 = vmatpush1.msra.mxu0 0.0
          %583 = vmatprep.subr.mxu0 0.0
          %584 = vmatpush1.msra.mxu0 0.0
          %585 = vmatprep.subr.mxu0 0.0
          %586 = vmatpush1.msra.mxu0 0.0
          %587 = vmatprep.subr.mxu0 0.0
          %588 = vmatpush1.msra.mxu0 0.0
          %589 = vmatprep.subr.mxu0 0.0
          %590 = vmatpush1.msra.mxu0 0.0
          %591 = vmatprep.subr.mxu0 0.0
          %592 = vmatpush1.msra.mxu0 0.0
          %593 = vmatprep.subr.mxu0 0.0
          %594 = vmatpush1.msra.mxu0 0.0
          %595 = vmatprep.subr.mxu0 0.0
          %596 = vmatpush1.msra.mxu0 0.0
          %597 = vmatprep.subr.mxu0 0.0
          %598 = vmatpush1.msra.mxu0 0.0
          %599 = vmatprep.subr.mxu0 0.0
          %600 = vmatpush1.msra.mxu0 0.0
          %601 = vmatprep.subr.mxu0 0.0
          %602 = vmatpush1.msra.mxu0 0.0
          %603 = vmatprep.subr.mxu0 0.0
          %604 = vmatpush1.msra.mxu0 0.0
          %605 = vmatprep.subr.mxu0 %v348
          %606 = vmatpush1.msra.mxu0 %v347
          %607 = vmatprep.subr.mxu0 0.0
          %608 = vmatpush2.msra.mxu0 0.0
          %609 = vmatprep.subr.mxu0 0.0
          %610 = vmatpush2.msra.mxu0 0.0
          %611 = vmatprep.subr.mxu0 0.0
          %612 = vmatpush2.msra.mxu0 0.0
          %613 = vmatprep.subr.mxu0 0.0
          %614 = vmatpush2.msra.mxu0 0.0
          %615 = vmatprep.subr.mxu0 0.0
          %616 = vmatpush2.msra.mxu0 0.0
          %617 = vmatprep.subr.mxu0 0.0
          %618 = vmatpush2.msra.mxu0 0.0
          %619 = vmatprep.subr.mxu0 0.0
          %620 = vmatpush2.msra.mxu0 0.0
          %621 = vmatprep.subr.mxu0 0.0
          %622 = vmatpush2.msra.mxu0 0.0
          %623 = vmatprep.subr.mxu0 0.0
          %624 = vmatpush2.msra.mxu0 0.0
          %625 = vmatprep.subr.mxu0 0.0
          %626 = vmatpush2.msra.mxu0 0.0
          %627 = vmatprep.subr.mxu0 0.0
          %628 = vmatpush2.msra.mxu0 0.0
          %629 = vmatprep.subr.mxu0 0.0
          %630 = vmatpush2.msra.mxu0 0.0
          %631 = vmatprep.subr.mxu0 0.0
          %632 = vmatpush2.msra.mxu0 0.0
          %633 = vmatprep.subr.mxu0 0.0
          %634 = vmatpush2.msra.mxu0 0.0
          %635 = vmatprep.subr.mxu0 0.0
          %636 = vmatpush2.msra.mxu0 0.0
          %637 = vmatprep.subr.mxu0 0.0
          %638 = vmatpush2.msra.mxu0 0.0
          %639 = vmatprep.mubr.f32.mxu0 0.0
          %640 = vmatmul.mubr.f32.gmra.mxu0 %v367
          %v641 = vpop.f32.mrf.mxu0
          %v642 = vadd.f32 %v360, %v641
          %v643 = vpop.f32.mrf.mxu0
          %v644 = vadd.f32 %v364, %v643
          %645 = vmatprep.mubr.f32.mxu0 0.0
          %646 = vmatmul.mubr.f32.gmra.mxu0 %v370
          %v647 = vpop.f32.mrf.mxu0
          %v648 = vadd.f32 %v360, %v647
          %v649 = vpop.f32.mrf.mxu0
          %v650 = vadd.f32 %v364, %v649
          %651 = vmatprep.mubr.f32.mxu0 0.0
          %652 = vmatmul.mubr.f32.gmra.mxu0 %v373
          %v653 = vpop.f32.mrf.mxu0
          %v654 = vadd.f32 %v360, %v653
          %v655 = vpop.f32.mrf.mxu0
          %v656 = vadd.f32 %v364, %v655
          %657 = vmatprep.mubr.f32.mxu0 0.0
          %658 = vmatmul.mubr.f32.gmra.mxu0 %v376
          %v659 = vpop.f32.mrf.mxu0
          %v660 = vadd.f32 %v360, %v659
          %v661 = vpop.f32.mrf.mxu0
          %v662 = vadd.f32 %v364, %v661
          %663 = vmatprep.mubr.f32.mxu0 0.0
          %664 = vmatmul.mubr.f32.gmra.mxu0 %v379
          %v665 = vpop.f32.mrf.mxu0
          %v666 = vadd.f32 %v360, %v665
          %v667 = vpop.f32.mrf.mxu0
          %v668 = vadd.f32 %v364, %v667
          %669 = vmatprep.mubr.f32.mxu0 0.0
          %670 = vmatmul.mubr.f32.gmra.mxu0 %v382
          %v671 = vpop.f32.mrf.mxu0
          %v672 = vadd.f32 %v360, %v671
          %v673 = vpop.f32.mrf.mxu0
          %v674 = vadd.f32 %v364, %v673
          %675 = vmatprep.mubr.f32.mxu0 0.0
          %676 = vmatmul.mubr.f32.gmra.mxu0 %v385
          %v677 = vpop.f32.mrf.mxu0
          %v678 = vadd.f32 %v360, %v677
          %v679 = vpop.f32.mrf.mxu0
          %v680 = vadd.f32 %v364, %v679
          %681 = vmatprep.mubr.f32.mxu0 0.0
          %682 = vmatmul.mubr.f32.gmra.mxu0 %v388
          %v683 = vpop.f32.mrf.mxu0
          %v684 = vadd.f32 %v360, %v683
          %v685 = vpop.f32.mrf.mxu0
          %v686 = vadd.f32 %v364, %v685
          %687 = vmatprep.mubr.f32.mxu0 0.0
          %688 = vmatmul.mubr.f32.gmra.mxu0 %v391
          %v689 = vpop.f32.mrf.mxu0
          %v690 = vadd.f32 %v360, %v689
          %v691 = vpop.f32.mrf.mxu0
          %v692 = vadd.f32 %v364, %v691
          %693 = vmatprep.mubr.f32.mxu0 0.0
          %694 = vmatmul.mubr.f32.gmra.mxu0 %v394
          %v695 = vpop.f32.mrf.mxu0
          %v696 = vadd.f32 %v360, %v695
          %v697 = vpop.f32.mrf.mxu0
          %v698 = vadd.f32 %v364, %v697
          %699 = vmatprep.mubr.f32.mxu0 0.0
          %700 = vmatmul.mubr.f32.gmra.mxu0 %v397
          %v701 = vpop.f32.mrf.mxu0
          %v702 = vadd.f32 %v360, %v701
          %v703 = vpop.f32.mrf.mxu0
          %v704 = vadd.f32 %v364, %v703
          %705 = vmatprep.mubr.f32.mxu0 0.0
          %706 = vmatmul.mubr.f32.gmra.mxu0 %v400
          %v707 = vpop.f32.mrf.mxu0
          %v708 = vadd.f32 %v360, %v707
          %v709 = vpop.f32.mrf.mxu0
          %v710 = vadd.f32 %v364, %v709
          %711 = vmatprep.mubr.f32.mxu0 0.0
          %712 = vmatmul.mubr.f32.gmra.mxu0 %v403
          %v713 = vpop.f32.mrf.mxu0
          %v714 = vadd.f32 %v360, %v713
          %v715 = vpop.f32.mrf.mxu0
          %v716 = vadd.f32 %v364, %v715
          %717 = vmatprep.mubr.f32.mxu0 0.0
          %718 = vmatmul.mubr.f32.gmra.mxu0 %v406
          %v719 = vpop.f32.mrf.mxu0
          %v720 = vadd.f32 %v360, %v719
          %v721 = vpop.f32.mrf.mxu0
          %v722 = vadd.f32 %v364, %v721
          %723 = vmatprep.mubr.f32.mxu0 0.0
          %724 = vmatmul.mubr.f32.gmra.mxu0 %v409
          %v725 = vpop.f32.mrf.mxu0
          %v726 = vadd.f32 %v360, %v725
          %v727 = vpop.f32.mrf.mxu0
          %v728 = vadd.f32 %v364, %v727
          %729 = vmatprep.mubr.f32.mxu0 0.0
          %730 = vmatmul.mubr.f32.gmra.mxu0 %v412
          %v731 = vpop.f32.mrf.mxu0
          %v732 = vadd.f32 %v360, %v731
          %v733 = vpop.f32.mrf.mxu0
          %v734 = vadd.f32 %v364, %v733
          %735 = vdwg.mxu0
          %v736 = vmax.f32 %v481, 0.0
          %v737 = vmax.f32 %v483, 0.0
          %v738 = vmax.f32 %v642, 0.0
          %v739 = vmax.f32 %v644, 0.0
          %v740 = vmax.f32 %v487, 0.0
          %v741 = vmax.f32 %v489, 0.0
          %v742 = vmax.f32 %v648, 0.0
          %v743 = vmax.f32 %v650, 0.0
          %v744 = vmax.f32 %v493, 0.0
          %v745 = vmax.f32 %v495, 0.0
          %v746 = vmax.f32 %v654, 0.0
          %v747 = vmax.f32 %v656, 0.0
          %v748 = vmax.f32 %v499, 0.0
          %v749 = vmax.f32 %v501, 0.0
          %v750 = vmax.f32 %v660, 0.0
          %v751 = vmax.f32 %v662, 0.0
          %v752 = vmax.f32 %v505, 0.0
          %v753 = vmax.f32 %v507, 0.0
          %v754 = vmax.f32 %v666, 0.0
          %v755 = vmax.f32 %v668, 0.0
          %v756 = vmax.f32 %v511, 0.0
          %v757 = vmax.f32 %v513, 0.0
          %v758 = vmax.f32 %v672, 0.0
          %v759 = vmax.f32 %v674, 0.0
          %v760 = vmax.f32 %v517, 0.0
          %v761 = vmax.f32 %v519, 0.0
          %v762 = vmax.f32 %v678, 0.0
          %v763 = vmax.f32 %v680, 0.0
          %v764 = vmax.f32 %v523, 0.0
          %v765 = vmax.f32 %v525, 0.0
          %v766 = vmax.f32 %v684, 0.0
          %v767 = vmax.f32 %v686, 0.0
          %v768 = vmax.f32 %v529, 0.0
          %v769 = vmax.f32 %v531, 0.0
          %v770 = vmax.f32 %v690, 0.0
          %v771 = vmax.f32 %v692, 0.0
          %v772 = vmax.f32 %v535, 0.0
          %v773 = vmax.f32 %v537, 0.0
          %v774 = vmax.f32 %v696, 0.0
          %v775 = vmax.f32 %v698, 0.0
          %v776 = vmax.f32 %v541, 0.0
          %v777 = vmax.f32 %v543, 0.0
          %v778 = vmax.f32 %v702, 0.0
          %v779 = vmax.f32 %v704, 0.0
          %v780 = vmax.f32 %v547, 0.0
          %v781 = vmax.f32 %v549, 0.0
          %v782 = vmax.f32 %v708, 0.0
          %v783 = vmax.f32 %v710, 0.0
          %v784 = vmax.f32 %v553, 0.0
          %v785 = vmax.f32 %v555, 0.0
          %v786 = vmax.f32 %v714, 0.0
          %v787 = vmax.f32 %v716, 0.0
          %v788 = vmax.f32 %v559, 0.0
          %v789 = vmax.f32 %v561, 0.0
          %v790 = vmax.f32 %v720, 0.0
          %v791 = vmax.f32 %v722, 0.0
          %v792 = vmax.f32 %v565, 0.0
          %v793 = vmax.f32 %v567, 0.0
          %v794 = vmax.f32 %v726, 0.0
          %v795 = vmax.f32 %v728, 0.0
          %v796 = vmax.f32 %v571, 0.0
          %v797 = vmax.f32 %v573, 0.0
          %v798 = vmax.f32 %v732, 0.0
          %v799 = vmax.f32 %v734, 0.0
          %v800 = vpack.c.bf16 %v740, %v736
          %v801 = vpack.c.bf16 %v741, %v737
          %v802 = vpack.c.bf16 %v742, %v738
          %v803 = vpack.c.bf16 %v743, %v739
          %v804 = vpack.c.bf16 %v748, %v744
          %v805 = vpack.c.bf16 %v749, %v745
          %v806 = vpack.c.bf16 %v750, %v746
          %v807 = vpack.c.bf16 %v751, %v747
          %v808 = vpack.c.bf16 %v756, %v752
          %v809 = vpack.c.bf16 %v757, %v753
          %v810 = vpack.c.bf16 %v758, %v754
          %v811 = vpack.c.bf16 %v759, %v755
          %v812 = vpack.c.bf16 %v764, %v760
          %v813 = vpack.c.bf16 %v765, %v761
          %v814 = vpack.c.bf16 %v766, %v762
          %v815 = vpack.c.bf16 %v767, %v763
          %v816 = vpack.c.bf16 %v772, %v768
          %v817 = vpack.c.bf16 %v773, %v769
          %v818 = vpack.c.bf16 %v774, %v770
          %v819 = vpack.c.bf16 %v775, %v771
          %v820 = vpack.c.bf16 %v780, %v776
          %v821 = vpack.c.bf16 %v781, %v777
          %v822 = vpack.c.bf16 %v782, %v778
          %v823 = vpack.c.bf16 %v783, %v779
          %v824 = vpack.c.bf16 %v788, %v784
          %v825 = vpack.c.bf16 %v789, %v785
          %v826 = vpack.c.bf16 %v790, %v786
          %v827 = vpack.c.bf16 %v791, %v787
          %v828 = vpack.c.bf16 %v796, %v792
          %v829 = vpack.c.bf16 %v797, %v793
          %v830 = vpack.c.bf16 %v798, %v794
          %v831 = vpack.c.bf16 %v799, %v795
          %v864 = vunpack.c.l.b16 %v800
          %v865 = vunpack.c.l.b16 %v801
          %v866 = vunpack.c.l.b16 %v802
          %v867 = vunpack.c.l.b16 %v803
          %v868 = vunpack.c.h.b16 %v800
          %v869 = vunpack.c.h.b16 %v801
          %v870 = vunpack.c.h.b16 %v802
          %v871 = vunpack.c.h.b16 %v803
          %v872 = vunpack.c.l.b16 %v804
          %v873 = vunpack.c.l.b16 %v805
          %v874 = vunpack.c.l.b16 %v806
          %v875 = vunpack.c.l.b16 %v807
          %v876 = vunpack.c.h.b16 %v804
          %v877 = vunpack.c.h.b16 %v805
          %v878 = vunpack.c.h.b16 %v806
          %v879 = vunpack.c.h.b16 %v807
          %v880 = vunpack.c.l.b16 %v808
          %v881 = vunpack.c.l.b16 %v809
          %v882 = vunpack.c.l.b16 %v810
          %v883 = vunpack.c.l.b16 %v811
          %v884 = vunpack.c.h.b16 %v808
          %v885 = vunpack.c.h.b16 %v809
          %v886 = vunpack.c.h.b16 %v810
          %v887 = vunpack.c.h.b16 %v811
          %v888 = vunpack.c.l.b16 %v812
          %v889 = vunpack.c.l.b16 %v813
          %v890 = vunpack.c.l.b16 %v814
          %v891 = vunpack.c.l.b16 %v815
          %v892 = vunpack.c.h.b16 %v812
          %v893 = vunpack.c.h.b16 %v813
          %v894 = vunpack.c.h.b16 %v814
          %v895 = vunpack.c.h.b16 %v815
          %v896 = vunpack.c.l.b16 %v816
          %v897 = vunpack.c.l.b16 %v817
          %v898 = vunpack.c.l.b16 %v818
          %v899 = vunpack.c.l.b16 %v819
          %v900 = vunpack.c.h.b16 %v816
          %v901 = vunpack.c.h.b16 %v817
          %v902 = vunpack.c.h.b16 %v818
          %v903 = vunpack.c.h.b16 %v819
          %v904 = vunpack.c.l.b16 %v820
          %v905 = vunpack.c.l.b16 %v821
          %v906 = vunpack.c.l.b16 %v822
          %v907 = vunpack.c.l.b16 %v823
          %v908 = vunpack.c.h.b16 %v820
          %v909 = vunpack.c.h.b16 %v821
          %v910 = vunpack.c.h.b16 %v822
          %v911 = vunpack.c.h.b16 %v823
          %v912 = vunpack.c.l.b16 %v824
          %v913 = vunpack.c.l.b16 %v825
          %v914 = vunpack.c.l.b16 %v826
          %v915 = vunpack.c.l.b16 %v827
          %v916 = vunpack.c.h.b16 %v824
          %v917 = vunpack.c.h.b16 %v825
          %v918 = vunpack.c.h.b16 %v826
          %v919 = vunpack.c.h.b16 %v827
          %v920 = vunpack.c.l.b16 %v828
          %v921 = vunpack.c.l.b16 %v829
          %v922 = vunpack.c.l.b16 %v830
          %v923 = vunpack.c.l.b16 %v831
          %v924 = vunpack.c.h.b16 %v828
          %v925 = vunpack.c.h.b16 %v829
          %v926 = vunpack.c.h.b16 %v830
          %v927 = vunpack.c.h.b16 %v831
          %v928 = vpack.c.b16 %v865, %v864
          %v929 = vpack.c.b16 %v867, %v866
          %v930 = vpack.c.b16 %v869, %v868
          %v931 = vpack.c.b16 %v871, %v870
          %v932 = vpack.c.b16 %v873, %v872
          %v933 = vpack.c.b16 %v875, %v874
          %v934 = vpack.c.b16 %v877, %v876
          %v935 = vpack.c.b16 %v879, %v878
          %v936 = vpack.c.b16 %v881, %v880
          %v937 = vpack.c.b16 %v883, %v882
          %v938 = vpack.c.b16 %v885, %v884
          %v939 = vpack.c.b16 %v887, %v886
          %v940 = vpack.c.b16 %v889, %v888
          %v941 = vpack.c.b16 %v891, %v890
          %v942 = vpack.c.b16 %v893, %v892
          %v943 = vpack.c.b16 %v895, %v894
          %v944 = vpack.c.b16 %v897, %v896
          %v945 = vpack.c.b16 %v899, %v898
          %v946 = vpack.c.b16 %v901, %v900
          %v947 = vpack.c.b16 %v903, %v902
          %v948 = vpack.c.b16 %v905, %v904
          %v949 = vpack.c.b16 %v907, %v906
          %v950 = vpack.c.b16 %v909, %v908
          %v951 = vpack.c.b16 %v911, %v910
          %v952 = vpack.c.b16 %v913, %v912
          %v953 = vpack.c.b16 %v915, %v914
          %v954 = vpack.c.b16 %v917, %v916
          %v955 = vpack.c.b16 %v919, %v918
          %v956 = vpack.c.b16 %v921, %v920
          %v957 = vpack.c.b16 %v923, %v922
          %v958 = vpack.c.b16 %v925, %v924
          %v959 = vpack.c.b16 %v927, %v926
          %992 = vst [vmem:[#allocation2] sm:$0xff] %v928
          %993 = vst [vmem:[#allocation2 + $0x8] sm:$0xff] %v929
          %994 = vst [vmem:[#allocation2 + $0x10] sm:$0xff] %v930
          %995 = vst [vmem:[#allocation2 + $0x18] sm:$0xff] %v931
          %996 = vst [vmem:[#allocation2 + $0x20] sm:$0xff] %v932
          %997 = vst [vmem:[#allocation2 + $0x28] sm:$0xff] %v933
          %998 = vst [vmem:[#allocation2 + $0x30] sm:$0xff] %v934
          %999 = vst [vmem:[#allocation2 + $0x38] sm:$0xff] %v935
          %1000 = vst [vmem:[#allocation2 + $0x40] sm:$0xff] %v936
          %1001 = vst [vmem:[#allocation2 + $0x48] sm:$0xff] %v937
          %1002 = vst [vmem:[#allocation2 + $0x50] sm:$0xff] %v938
          %1003 = vst [vmem:[#allocation2 + $0x58] sm:$0xff] %v939
          %1004 = vst [vmem:[#allocation2 + $0x60] sm:$0xff] %v940
          %1005 = vst [vmem:[#allocation2 + $0x68] sm:$0xff] %v941
          %1006 = vst [vmem:[#allocation2 + $0x70] sm:$0xff] %v942
          %1007 = vst [vmem:[#allocation2 + $0x78] sm:$0xff] %v943
          %1008 = vst [vmem:[#allocation2 + $0x80] sm:$0xff] %v944
          %1009 = vst [vmem:[#allocation2 + $0x88] sm:$0xff] %v945
          %1010 = vst [vmem:[#allocation2 + $0x90] sm:$0xff] %v946
          %1011 = vst [vmem:[#allocation2 + $0x98] sm:$0xff] %v947
          %1012 = vst [vmem:[#allocation2 + $0xa0] sm:$0xff] %v948
          %1013 = vst [vmem:[#allocation2 + $0xa8] sm:$0xff] %v949
          %1014 = vst [vmem:[#allocation2 + $0xb0] sm:$0xff] %v950
          %1015 = vst [vmem:[#allocation2 + $0xb8] sm:$0xff] %v951
          %1016 = vst [vmem:[#allocation2 + $0xc0] sm:$0xff] %v952
          %1017 = vst [vmem:[#allocation2 + $0xc8] sm:$0xff] %v953
          %1018 = vst [vmem:[#allocation2 + $0xd0] sm:$0xff] %v954
          %1019 = vst [vmem:[#allocation2 + $0xd8] sm:$0xff] %v955
          %1020 = vst [vmem:[#allocation2 + $0xe0] sm:$0xff] %v956
          %1021 = vst [vmem:[#allocation2 + $0xe8] sm:$0xff] %v957
          %1022 = vst [vmem:[#allocation2 + $0xf0] sm:$0xff] %v958
          %1023 = vst [vmem:[#allocation2 + $0xf8] sm:$0xff] %v959
        $region60: #{dqn_forward.1} parent=39 // pred_fallthru
          _
        %v1024 = vlaneseq
        %v1025 = vshrl.u32 %v1024, 7
        %s1026 = sadd.s32 %s26, 1
        %v1027 = vstv %s1026
        %vm1028 = vcmp.eq.s32.totalorder %v1025, %v1027
        %v1029 = vsel %vm1028, 1, 0
        %vm1030 = vcmp.eq.s32.totalorder %v1029, 1
        %v1031 = vsel %vm1030, %v321, 0.0
        %v1032 = vsel %vm1030, %v322, 0.0
        %v1033 = vsel %vm1030, %v323, 0.0
        %v1034 = vsel %vm1030, %v324, 0.0
        %v1035 = vrot.slane %v1031, 4
        %v1036 = vadd.f32 %v1031, %v1035
        %v1037 = vrot.slane %v1036, 2
        %v1038 = vadd.f32 %v1036, %v1037
        %v1039 = vrot.slane %v1038, 1
        %v1040 = vadd.f32 %v1038, %v1039
        %v1041 = vrot.slane %v1032, 4
        %v1042 = vadd.f32 %v1032, %v1041
        %v1043 = vrot.slane %v1042, 2
        %v1044 = vadd.f32 %v1042, %v1043
        %v1045 = vrot.slane %v1044, 1
        %v1046 = vadd.f32 %v1044, %v1045
        %v1047 = vrot.slane %v1033, 4
        %v1048 = vadd.f32 %v1033, %v1047
        %v1049 = vrot.slane %v1048, 2
        %v1050 = vadd.f32 %v1048, %v1049
        %v1051 = vrot.slane %v1050, 1
        %v1052 = vadd.f32 %v1050, %v1051
        %v1053 = vrot.slane %v1034, 4
        %v1054 = vadd.f32 %v1034, %v1053
        %v1055 = vrot.slane %v1054, 2
        %v1056 = vadd.f32 %v1054, %v1055
        %v1057 = vrot.slane %v1056, 1
        %v1058 = vadd.f32 %v1056, %v1057
        %v1059 = vld [vmem:[#allocation2] sm:$0xff]
        %v1060 = vld [vmem:[#allocation2 + $0x8] sm:$0xff]
        %v1061 = vld [vmem:[#allocation2 + $0x10] sm:$0xff]
        %v1062 = vld [vmem:[#allocation2 + $0x18] sm:$0xff]
        %v1063 = vld [vmem:[#allocation2 + $0x20] sm:$0xff]
        %v1064 = vld [vmem:[#allocation2 + $0x28] sm:$0xff]
        %v1065 = vld [vmem:[#allocation2 + $0x30] sm:$0xff]
        %v1066 = vld [vmem:[#allocation2 + $0x38] sm:$0xff]
        %v1067 = vld [vmem:[#allocation2 + $0x40] sm:$0xff]
        %v1068 = vld [vmem:[#allocation2 + $0x48] sm:$0xff]
        %v1069 = vld [vmem:[#allocation2 + $0x50] sm:$0xff]
        %v1070 = vld [vmem:[#allocation2 + $0x58] sm:$0xff]
        %v1071 = vld [vmem:[#allocation2 + $0x60] sm:$0xff]
        %v1072 = vld [vmem:[#allocation2 + $0x68] sm:$0xff]
        %v1073 = vld [vmem:[#allocation2 + $0x70] sm:$0xff]
        %v1074 = vld [vmem:[#allocation2 + $0x78] sm:$0xff]
        %v1075 = vld [vmem:[#allocation2 + $0x80] sm:$0xff]
        %v1076 = vld [vmem:[#allocation2 + $0x88] sm:$0xff]
        %v1077 = vld [vmem:[#allocation2 + $0x90] sm:$0xff]
        %v1078 = vld [vmem:[#allocation2 + $0x98] sm:$0xff]
        %v1079 = vld [vmem:[#allocation2 + $0xa0] sm:$0xff]
        %v1080 = vld [vmem:[#allocation2 + $0xa8] sm:$0xff]
        %v1081 = vld [vmem:[#allocation2 + $0xb0] sm:$0xff]
        %v1082 = vld [vmem:[#allocation2 + $0xb8] sm:$0xff]
        %v1083 = vld [vmem:[#allocation2 + $0xc0] sm:$0xff]
        %v1084 = vld [vmem:[#allocation2 + $0xc8] sm:$0xff]
        %v1085 = vld [vmem:[#allocation2 + $0xd0] sm:$0xff]
        %v1086 = vld [vmem:[#allocation2 + $0xd8] sm:$0xff]
        %v1087 = vld [vmem:[#allocation2 + $0xe0] sm:$0xff]
        %v1088 = vld [vmem:[#allocation2 + $0xe8] sm:$0xff]
        %v1089 = vld [vmem:[#allocation2 + $0xf0] sm:$0xff]
        %v1090 = vld [vmem:[#allocation2 + $0xf8] sm:$0xff]
        %v1091 = vld [vmem:[%s268] sm:$0xff]
        %v1092 = vld [vmem:[%s268 + $0x8] sm:$0xff]
        %v1093 = vld [vmem:[%s268 + $0x10] sm:$0xff]
        %v1094 = vld [vmem:[%s268 + $0x18] sm:$0xff]
        %v1095 = vld [vmem:[%s268 + $0x20] sm:$0xff]
        %v1096 = vld [vmem:[%s268 + $0x28] sm:$0xff]
        %v1097 = vld [vmem:[%s268 + $0x30] sm:$0xff]
        %v1098 = vld [vmem:[%s268 + $0x38] sm:$0xff]
        %v1099 = vld [vmem:[%s268 + $0x40] sm:$0xff]
        %v1100 = vld [vmem:[%s268 + $0x48] sm:$0xff]
        %v1101 = vld [vmem:[%s268 + $0x50] sm:$0xff]
        %v1102 = vld [vmem:[%s268 + $0x58] sm:$0xff]
        %v1103 = vld [vmem:[%s268 + $0x60] sm:$0xff]
        %v1104 = vld [vmem:[%s268 + $0x68] sm:$0xff]
        %v1105 = vld [vmem:[%s268 + $0x70] sm:$0xff]
        %v1106 = vld [vmem:[%s268 + $0x78] sm:$0xff]
        %v1107 = vld [vmem:[%s268 + $0x80] sm:$0xff]
        %v1108 = vld [vmem:[%s268 + $0x88] sm:$0xff]
        %v1109 = vld [vmem:[%s268 + $0x90] sm:$0xff]
        %v1110 = vld [vmem:[%s268 + $0x98] sm:$0xff]
        %v1111 = vld [vmem:[%s268 + $0xa0] sm:$0xff]
        %v1112 = vld [vmem:[%s268 + $0xa8] sm:$0xff]
        %v1113 = vld [vmem:[%s268 + $0xb0] sm:$0xff]
        %v1114 = vld [vmem:[%s268 + $0xb8] sm:$0xff]
        %v1115 = vld [vmem:[%s268 + $0xc0] sm:$0xff]
        %v1116 = vld [vmem:[%s268 + $0xc8] sm:$0xff]
        %v1117 = vld [vmem:[%s268 + $0xd0] sm:$0xff]
        %v1118 = vld [vmem:[%s268 + $0xd8] sm:$0xff]
        %v1119 = vld [vmem:[%s268 + $0xe0] sm:$0xff]
        %v1120 = vld [vmem:[%s268 + $0xe8] sm:$0xff]
        %v1121 = vld [vmem:[%s268 + $0xf0] sm:$0xff]
        %v1122 = vld [vmem:[%s268 + $0xf8] sm:$0xff]
        %v1123 = vld [vmem:[%s268 + $0x100] sm:$0xff]
        %v1124 = vld [vmem:[%s268 + $0x108] sm:$0xff]
        %v1125 = vld [vmem:[%s268 + $0x110] sm:$0xff]
        %v1126 = vld [vmem:[%s268 + $0x118] sm:$0xff]
        %v1127 = vld [vmem:[%s268 + $0x120] sm:$0xff]
        %v1128 = vld [vmem:[%s268 + $0x128] sm:$0xff]
        %v1129 = vld [vmem:[%s268 + $0x130] sm:$0xff]
        %v1130 = vld [vmem:[%s268 + $0x138] sm:$0xff]
        %v1131 = vld [vmem:[%s268 + $0x140] sm:$0xff]
        %v1132 = vld [vmem:[%s268 + $0x148] sm:$0xff]
        %v1133 = vld [vmem:[%s268 + $0x150] sm:$0xff]
        %v1134 = vld [vmem:[%s268 + $0x158] sm:$0xff]
        %v1135 = vld [vmem:[%s268 + $0x160] sm:$0xff]
        %v1136 = vld [vmem:[%s268 + $0x168] sm:$0xff]
        %v1137 = vld [vmem:[%s268 + $0x170] sm:$0xff]
        %v1138 = vld [vmem:[%s268 + $0x178] sm:$0xff]
        %v1139 = vld [vmem:[%s268 + $0x180] sm:$0xff]
        %v1140 = vld [vmem:[%s268 + $0x188] sm:$0xff]
        %v1141 = vld [vmem:[%s268 + $0x190] sm:$0xff]
        %v1142 = vld [vmem:[%s268 + $0x198] sm:$0xff]
        %v1143 = vld [vmem:[%s268 + $0x1a0] sm:$0xff]
        %v1144 = vld [vmem:[%s268 + $0x1a8] sm:$0xff]
        %v1145 = vld [vmem:[%s268 + $0x1b0] sm:$0xff]
        %v1146 = vld [vmem:[%s268 + $0x1b8] sm:$0xff]
        %v1147 = vld [vmem:[%s268 + $0x1c0] sm:$0xff]
        %v1148 = vld [vmem:[%s268 + $0x1c8] sm:$0xff]
        %v1149 = vld [vmem:[%s268 + $0x1d0] sm:$0xff]
        %v1150 = vld [vmem:[%s268 + $0x1d8] sm:$0xff]
        %v1151 = vld [vmem:[%s268 + $0x1e0] sm:$0xff]
        %v1152 = vld [vmem:[%s268 + $0x1e8] sm:$0xff]
        %v1153 = vld [vmem:[%s268 + $0x1f0] sm:$0xff]
        %v1154 = vld [vmem:[%s268 + $0x1f8] sm:$0xff]
        %v1155 = vld [vmem:[%s268 + $0x200] sm:$0xff]
        %v1156 = vld [vmem:[%s268 + $0x208] sm:$0xff]
        %v1157 = vld [vmem:[%s268 + $0x210] sm:$0xff]
        %v1158 = vld [vmem:[%s268 + $0x218] sm:$0xff]
        %v1159 = vld [vmem:[%s268 + $0x220] sm:$0xff]
        %v1160 = vld [vmem:[%s268 + $0x228] sm:$0xff]
        %v1161 = vld [vmem:[%s268 + $0x230] sm:$0xff]
        %v1162 = vld [vmem:[%s268 + $0x238] sm:$0xff]
        %v1163 = vld [vmem:[%s268 + $0x240] sm:$0xff]
        %v1164 = vld [vmem:[%s268 + $0x248] sm:$0xff]
        %v1165 = vld [vmem:[%s268 + $0x250] sm:$0xff]
        %v1166 = vld [vmem:[%s268 + $0x258] sm:$0xff]
        %v1167 = vld [vmem:[%s268 + $0x260] sm:$0xff]
        %v1168 = vld [vmem:[%s268 + $0x268] sm:$0xff]
        %v1169 = vld [vmem:[%s268 + $0x270] sm:$0xff]
        %v1170 = vld [vmem:[%s268 + $0x278] sm:$0xff]
        %v1171 = vld [vmem:[%s268 + $0x280] sm:$0xff]
        %v1172 = vld [vmem:[%s268 + $0x288] sm:$0xff]
        %v1173 = vld [vmem:[%s268 + $0x290] sm:$0xff]
        %v1174 = vld [vmem:[%s268 + $0x298] sm:$0xff]
        %v1175 = vld [vmem:[%s268 + $0x2a0] sm:$0xff]
        %v1176 = vld [vmem:[%s268 + $0x2a8] sm:$0xff]
        %v1177 = vld [vmem:[%s268 + $0x2b0] sm:$0xff]
        %v1178 = vld [vmem:[%s268 + $0x2b8] sm:$0xff]
        %v1179 = vld [vmem:[%s268 + $0x2c0] sm:$0xff]
        %v1180 = vld [vmem:[%s268 + $0x2c8] sm:$0xff]
        %v1181 = vld [vmem:[%s268 + $0x2d0] sm:$0xff]
        %v1182 = vld [vmem:[%s268 + $0x2d8] sm:$0xff]
        %v1183 = vld [vmem:[%s268 + $0x2e0] sm:$0xff]
        %v1184 = vld [vmem:[%s268 + $0x2e8] sm:$0xff]
        %v1185 = vld [vmem:[%s268 + $0x2f0] sm:$0xff]
        %v1186 = vld [vmem:[%s268 + $0x2f8] sm:$0xff]
        %v1187 = vld [vmem:[%s268 + $0x300] sm:$0xff]
        %v1188 = vld [vmem:[%s268 + $0x308] sm:$0xff]
        %v1189 = vld [vmem:[%s268 + $0x310] sm:$0xff]
        %v1190 = vld [vmem:[%s268 + $0x318] sm:$0xff]
        %v1191 = vld [vmem:[%s268 + $0x320] sm:$0xff]
        %v1192 = vld [vmem:[%s268 + $0x328] sm:$0xff]
        %v1193 = vld [vmem:[%s268 + $0x330] sm:$0xff]
        %v1194 = vld [vmem:[%s268 + $0x338] sm:$0xff]
        %v1195 = vld [vmem:[%s268 + $0x340] sm:$0xff]
        %v1196 = vld [vmem:[%s268 + $0x348] sm:$0xff]
        %v1197 = vld [vmem:[%s268 + $0x350] sm:$0xff]
        %v1198 = vld [vmem:[%s268 + $0x358] sm:$0xff]
        %v1199 = vld [vmem:[%s268 + $0x360] sm:$0xff]
        %v1200 = vld [vmem:[%s268 + $0x368] sm:$0xff]
        %v1201 = vld [vmem:[%s268 + $0x370] sm:$0xff]
        %v1202 = vld [vmem:[%s268 + $0x378] sm:$0xff]
        %v1203 = vld [vmem:[%s268 + $0x380] sm:$0xff]
        %v1204 = vld [vmem:[%s268 + $0x388] sm:$0xff]
        %v1205 = vld [vmem:[%s268 + $0x390] sm:$0xff]
        %v1206 = vld [vmem:[%s268 + $0x398] sm:$0xff]
        %v1207 = vld [vmem:[%s268 + $0x3a0] sm:$0xff]
        %v1208 = vld [vmem:[%s268 + $0x3a8] sm:$0xff]
        %v1209 = vld [vmem:[%s268 + $0x3b0] sm:$0xff]
        %v1210 = vld [vmem:[%s268 + $0x3b8] sm:$0xff]
        %v1211 = vld [vmem:[%s268 + $0x3c0] sm:$0xff]
        %v1212 = vld [vmem:[%s268 + $0x3c8] sm:$0xff]
        %v1213 = vld [vmem:[%s268 + $0x3d0] sm:$0xff]
        %v1214 = vld [vmem:[%s268 + $0x3d8] sm:$0xff]
        %v1215 = vld [vmem:[%s268 + $0x3e0] sm:$0xff]
        %v1216 = vld [vmem:[%s268 + $0x3e8] sm:$0xff]
        %v1217 = vld [vmem:[%s268 + $0x3f0] sm:$0xff]
        %v1218 = vld [vmem:[%s268 + $0x3f8] sm:$0xff]
        %v1251 = vunpack.c.l.b16 %v1059
        %v1252 = vunpack.c.h.b16 %v1059
        %v1253 = vunpack.c.l.b16 %v1060
        %v1254 = vunpack.c.h.b16 %v1060
        %v1255 = vunpack.c.l.b16 %v1061
        %v1256 = vunpack.c.h.b16 %v1061
        %v1257 = vunpack.c.l.b16 %v1062
        %v1258 = vunpack.c.h.b16 %v1062
        %v1259 = vunpack.c.l.b16 %v1063
        %v1260 = vunpack.c.h.b16 %v1063
        %v1261 = vunpack.c.l.b16 %v1064
        %v1262 = vunpack.c.h.b16 %v1064
        %v1263 = vunpack.c.l.b16 %v1065
        %v1264 = vunpack.c.h.b16 %v1065
        %v1265 = vunpack.c.l.b16 %v1066
        %v1266 = vunpack.c.h.b16 %v1066
        %v1267 = vunpack.c.l.b16 %v1067
        %v1268 = vunpack.c.h.b16 %v1067
        %v1269 = vunpack.c.l.b16 %v1068
        %v1270 = vunpack.c.h.b16 %v1068
        %v1271 = vunpack.c.l.b16 %v1069
        %v1272 = vunpack.c.h.b16 %v1069
        %v1273 = vunpack.c.l.b16 %v1070
        %v1274 = vunpack.c.h.b16 %v1070
        %v1275 = vunpack.c.l.b16 %v1071
        %v1276 = vunpack.c.h.b16 %v1071
        %v1277 = vunpack.c.l.b16 %v1072
        %v1278 = vunpack.c.h.b16 %v1072
        %v1279 = vunpack.c.l.b16 %v1073
        %v1280 = vunpack.c.h.b16 %v1073
        %v1281 = vunpack.c.l.b16 %v1074
        %v1282 = vunpack.c.h.b16 %v1074
        %v1283 = vunpack.c.l.b16 %v1075
        %v1284 = vunpack.c.h.b16 %v1075
        %v1285 = vunpack.c.l.b16 %v1076
        %v1286 = vunpack.c.h.b16 %v1076
        %v1287 = vunpack.c.l.b16 %v1077
        %v1288 = vunpack.c.h.b16 %v1077
        %v1289 = vunpack.c.l.b16 %v1078
        %v1290 = vunpack.c.h.b16 %v1078
        %v1291 = vunpack.c.l.b16 %v1079
        %v1292 = vunpack.c.h.b16 %v1079
        %v1293 = vunpack.c.l.b16 %v1080
        %v1294 = vunpack.c.h.b16 %v1080
        %v1295 = vunpack.c.l.b16 %v1081
        %v1296 = vunpack.c.h.b16 %v1081
        %v1297 = vunpack.c.l.b16 %v1082
        %v1298 = vunpack.c.h.b16 %v1082
        %v1299 = vunpack.c.l.b16 %v1083
        %v1300 = vunpack.c.h.b16 %v1083
        %v1301 = vunpack.c.l.b16 %v1084
        %v1302 = vunpack.c.h.b16 %v1084
        %v1303 = vunpack.c.l.b16 %v1085
        %v1304 = vunpack.c.h.b16 %v1085
        %v1305 = vunpack.c.l.b16 %v1086
        %v1306 = vunpack.c.h.b16 %v1086
        %v1307 = vunpack.c.l.b16 %v1087
        %v1308 = vunpack.c.h.b16 %v1087
        %v1309 = vunpack.c.l.b16 %v1088
        %v1310 = vunpack.c.h.b16 %v1088
        %v1311 = vunpack.c.l.b16 %v1089
        %v1312 = vunpack.c.h.b16 %v1089
        %v1313 = vunpack.c.l.b16 %v1090
        %v1314 = vunpack.c.h.b16 %v1090
        %v1315 = vpack.c.b16 %v1255, %v1251
        %v1316 = vpack.c.b16 %v1256, %v1252
        %v1317 = vpack.c.b16 %v1257, %v1253
        %v1318 = vpack.c.b16 %v1258, %v1254
        %v1319 = vpack.c.b16 %v1263, %v1259
        %v1320 = vpack.c.b16 %v1264, %v1260
        %v1321 = vpack.c.b16 %v1265, %v1261
        %v1322 = vpack.c.b16 %v1266, %v1262
        %v1323 = vpack.c.b16 %v1271, %v1267
        %v1324 = vpack.c.b16 %v1272, %v1268
        %v1325 = vpack.c.b16 %v1273, %v1269
        %v1326 = vpack.c.b16 %v1274, %v1270
        %v1327 = vpack.c.b16 %v1279, %v1275
        %v1328 = vpack.c.b16 %v1280, %v1276
        %v1329 = vpack.c.b16 %v1281, %v1277
        %v1330 = vpack.c.b16 %v1282, %v1278
        %v1331 = vpack.c.b16 %v1287, %v1283
        %v1332 = vpack.c.b16 %v1288, %v1284
        %v1333 = vpack.c.b16 %v1289, %v1285
        %v1334 = vpack.c.b16 %v1290, %v1286
        %v1335 = vpack.c.b16 %v1295, %v1291
        %v1336 = vpack.c.b16 %v1296, %v1292
        %v1337 = vpack.c.b16 %v1297, %v1293
        %v1338 = vpack.c.b16 %v1298, %v1294
        %v1339 = vpack.c.b16 %v1303, %v1299
        %v1340 = vpack.c.b16 %v1304, %v1300
        %v1341 = vpack.c.b16 %v1305, %v1301
        %v1342 = vpack.c.b16 %v1306, %v1302
        %v1343 = vpack.c.b16 %v1311, %v1307
        %v1344 = vpack.c.b16 %v1312, %v1308
        %v1345 = vpack.c.b16 %v1313, %v1309
        %v1346 = vpack.c.b16 %v1314, %v1310
        %v1507 = vunpack.c.l.b16 %v1091
        %v1508 = vunpack.c.h.b16 %v1091
        %v1509 = vunpack.c.l.b16 %v1092
        %v1510 = vunpack.c.h.b16 %v1092
        %v1511 = vunpack.c.l.b16 %v1093
        %v1512 = vunpack.c.h.b16 %v1093
        %v1513 = vunpack.c.l.b16 %v1094
        %v1514 = vunpack.c.h.b16 %v1094
        %v1515 = vunpack.c.l.b16 %v1095
        %v1516 = vunpack.c.h.b16 %v1095
        %v1517 = vunpack.c.l.b16 %v1096
        %v1518 = vunpack.c.h.b16 %v1096
        %v1519 = vunpack.c.l.b16 %v1097
        %v1520 = vunpack.c.h.b16 %v1097
        %v1521 = vunpack.c.l.b16 %v1098
        %v1522 = vunpack.c.h.b16 %v1098
        %v1523 = vunpack.c.l.b16 %v1099
        %v1524 = vunpack.c.h.b16 %v1099
        %v1525 = vunpack.c.l.b16 %v1100
        %v1526 = vunpack.c.h.b16 %v1100
        %v1527 = vunpack.c.l.b16 %v1101
        %v1528 = vunpack.c.h.b16 %v1101
        %v1529 = vunpack.c.l.b16 %v1102
        %v1530 = vunpack.c.h.b16 %v1102
        %v1531 = vunpack.c.l.b16 %v1103
        %v1532 = vunpack.c.h.b16 %v1103
        %v1533 = vunpack.c.l.b16 %v1104
        %v1534 = vunpack.c.h.b16 %v1104
        %v1535 = vunpack.c.l.b16 %v1105
        %v1536 = vunpack.c.h.b16 %v1105
        %v1537 = vunpack.c.l.b16 %v1106
        %v1538 = vunpack.c.h.b16 %v1106
        %v1539 = vunpack.c.l.b16 %v1107
        %v1540 = vunpack.c.h.b16 %v1107
        %v1541 = vunpack.c.l.b16 %v1108
        %v1542 = vunpack.c.h.b16 %v1108
        %v1543 = vunpack.c.l.b16 %v1109
        %v1544 = vunpack.c.h.b16 %v1109
        %v1545 = vunpack.c.l.b16 %v1110
        %v1546 = vunpack.c.h.b16 %v1110
        %v1547 = vunpack.c.l.b16 %v1111
        %v1548 = vunpack.c.h.b16 %v1111
        %v1549 = vunpack.c.l.b16 %v1112
        %v1550 = vunpack.c.h.b16 %v1112
        %v1551 = vunpack.c.l.b16 %v1113
        %v1552 = vunpack.c.h.b16 %v1113
        %v1553 = vunpack.c.l.b16 %v1114
        %v1554 = vunpack.c.h.b16 %v1114
        %v1555 = vunpack.c.l.b16 %v1115
        %v1556 = vunpack.c.h.b16 %v1115
        %v1557 = vunpack.c.l.b16 %v1116
        %v1558 = vunpack.c.h.b16 %v1116
        %v1559 = vunpack.c.l.b16 %v1117
        %v1560 = vunpack.c.h.b16 %v1117
        %v1561 = vunpack.c.l.b16 %v1118
        %v1562 = vunpack.c.h.b16 %v1118
        %v1563 = vunpack.c.l.b16 %v1119
        %v1564 = vunpack.c.h.b16 %v1119
        %v1565 = vunpack.c.l.b16 %v1120
        %v1566 = vunpack.c.h.b16 %v1120
        %v1567 = vunpack.c.l.b16 %v1121
        %v1568 = vunpack.c.h.b16 %v1121
        %v1569 = vunpack.c.l.b16 %v1122
        %v1570 = vunpack.c.h.b16 %v1122
        %v1571 = vunpack.c.l.b16 %v1123
        %v1572 = vunpack.c.h.b16 %v1123
        %v1573 = vunpack.c.l.b16 %v1124
        %v1574 = vunpack.c.h.b16 %v1124
        %v1575 = vunpack.c.l.b16 %v1125
        %v1576 = vunpack.c.h.b16 %v1125
        %v1577 = vunpack.c.l.b16 %v1126
        %v1578 = vunpack.c.h.b16 %v1126
        %v1579 = vunpack.c.l.b16 %v1127
        %v1580 = vunpack.c.h.b16 %v1127
        %v1581 = vunpack.c.l.b16 %v1128
        %v1582 = vunpack.c.h.b16 %v1128
        %v1583 = vunpack.c.l.b16 %v1129
        %v1584 = vunpack.c.h.b16 %v1129
        %v1585 = vunpack.c.l.b16 %v1130
        %v1586 = vunpack.c.h.b16 %v1130
        %v1587 = vunpack.c.l.b16 %v1131
        %v1588 = vunpack.c.h.b16 %v1131
        %v1589 = vunpack.c.l.b16 %v1132
        %v1590 = vunpack.c.h.b16 %v1132
        %v1591 = vunpack.c.l.b16 %v1133
        %v1592 = vunpack.c.h.b16 %v1133
        %v1593 = vunpack.c.l.b16 %v1134
        %v1594 = vunpack.c.h.b16 %v1134
        %v1595 = vunpack.c.l.b16 %v1135
        %v1596 = vunpack.c.h.b16 %v1135
        %v1597 = vunpack.c.l.b16 %v1136
        %v1598 = vunpack.c.h.b16 %v1136
        %v1599 = vunpack.c.l.b16 %v1137
        %v1600 = vunpack.c.h.b16 %v1137
        %v1601 = vunpack.c.l.b16 %v1138
        %v1602 = vunpack.c.h.b16 %v1138
        %v1603 = vunpack.c.l.b16 %v1139
        %v1604 = vunpack.c.h.b16 %v1139
        %v1605 = vunpack.c.l.b16 %v1140
        %v1606 = vunpack.c.h.b16 %v1140
        %v1607 = vunpack.c.l.b16 %v1141
        %v1608 = vunpack.c.h.b16 %v1141
        %v1609 = vunpack.c.l.b16 %v1142
        %v1610 = vunpack.c.h.b16 %v1142
        %v1611 = vunpack.c.l.b16 %v1143
        %v1612 = vunpack.c.h.b16 %v1143
        %v1613 = vunpack.c.l.b16 %v1144
        %v1614 = vunpack.c.h.b16 %v1144
        %v1615 = vunpack.c.l.b16 %v1145
        %v1616 = vunpack.c.h.b16 %v1145
        %v1617 = vunpack.c.l.b16 %v1146
        %v1618 = vunpack.c.h.b16 %v1146
        %v1619 = vunpack.c.l.b16 %v1147
        %v1620 = vunpack.c.h.b16 %v1147
        %v1621 = vunpack.c.l.b16 %v1148
        %v1622 = vunpack.c.h.b16 %v1148
        %v1623 = vunpack.c.l.b16 %v1149
        %v1624 = vunpack.c.h.b16 %v1149
        %v1625 = vunpack.c.l.b16 %v1150
        %v1626 = vunpack.c.h.b16 %v1150
        %v1627 = vunpack.c.l.b16 %v1151
        %v1628 = vunpack.c.h.b16 %v1151
        %v1629 = vunpack.c.l.b16 %v1152
        %v1630 = vunpack.c.h.b16 %v1152
        %v1631 = vunpack.c.l.b16 %v1153
        %v1632 = vunpack.c.h.b16 %v1153
        %v1633 = vunpack.c.l.b16 %v1154
        %v1634 = vunpack.c.h.b16 %v1154
        %v1635 = vunpack.c.l.b16 %v1155
        %v1636 = vunpack.c.h.b16 %v1155
        %v1637 = vunpack.c.l.b16 %v1156
        %v1638 = vunpack.c.h.b16 %v1156
        %v1639 = vunpack.c.l.b16 %v1157
        %v1640 = vunpack.c.h.b16 %v1157
        %v1641 = vunpack.c.l.b16 %v1158
        %v1642 = vunpack.c.h.b16 %v1158
        %v1643 = vunpack.c.l.b16 %v1159
        %v1644 = vunpack.c.h.b16 %v1159
        %v1645 = vunpack.c.l.b16 %v1160
        %v1646 = vunpack.c.h.b16 %v1160
        %v1647 = vunpack.c.l.b16 %v1161
        %v1648 = vunpack.c.h.b16 %v1161
        %v1649 = vunpack.c.l.b16 %v1162
        %v1650 = vunpack.c.h.b16 %v1162
        %v1651 = vunpack.c.l.b16 %v1163
        %v1652 = vunpack.c.h.b16 %v1163
        %v1653 = vunpack.c.l.b16 %v1164
        %v1654 = vunpack.c.h.b16 %v1164
        %v1655 = vunpack.c.l.b16 %v1165
        %v1656 = vunpack.c.h.b16 %v1165
        %v1657 = vunpack.c.l.b16 %v1166
        %v1658 = vunpack.c.h.b16 %v1166
        %v1659 = vunpack.c.l.b16 %v1167
        %v1660 = vunpack.c.h.b16 %v1167
        %v1661 = vunpack.c.l.b16 %v1168
        %v1662 = vunpack.c.h.b16 %v1168
        %v1663 = vunpack.c.l.b16 %v1169
        %v1664 = vunpack.c.h.b16 %v1169
        %v1665 = vunpack.c.l.b16 %v1170
        %v1666 = vunpack.c.h.b16 %v1170
        %v1667 = vunpack.c.l.b16 %v1171
        %v1668 = vunpack.c.h.b16 %v1171
        %v1669 = vunpack.c.l.b16 %v1172
        %v1670 = vunpack.c.h.b16 %v1172
        %v1671 = vunpack.c.l.b16 %v1173
        %v1672 = vunpack.c.h.b16 %v1173
        %v1673 = vunpack.c.l.b16 %v1174
        %v1674 = vunpack.c.h.b16 %v1174
        %v1675 = vunpack.c.l.b16 %v1175
        %v1676 = vunpack.c.h.b16 %v1175
        %v1677 = vunpack.c.l.b16 %v1176
        %v1678 = vunpack.c.h.b16 %v1176
        %v1679 = vunpack.c.l.b16 %v1177
        %v1680 = vunpack.c.h.b16 %v1177
        %v1681 = vunpack.c.l.b16 %v1178
        %v1682 = vunpack.c.h.b16 %v1178
        %v1683 = vunpack.c.l.b16 %v1179
        %v1684 = vunpack.c.h.b16 %v1179
        %v1685 = vunpack.c.l.b16 %v1180
        %v1686 = vunpack.c.h.b16 %v1180
        %v1687 = vunpack.c.l.b16 %v1181
        %v1688 = vunpack.c.h.b16 %v1181
        %v1689 = vunpack.c.l.b16 %v1182
        %v1690 = vunpack.c.h.b16 %v1182
        %v1691 = vunpack.c.l.b16 %v1183
        %v1692 = vunpack.c.h.b16 %v1183
        %v1693 = vunpack.c.l.b16 %v1184
        %v1694 = vunpack.c.h.b16 %v1184
        %v1695 = vunpack.c.l.b16 %v1185
        %v1696 = vunpack.c.h.b16 %v1185
        %v1697 = vunpack.c.l.b16 %v1186
        %v1698 = vunpack.c.h.b16 %v1186
        %v1699 = vunpack.c.l.b16 %v1187
        %v1700 = vunpack.c.h.b16 %v1187
        %v1701 = vunpack.c.l.b16 %v1188
        %v1702 = vunpack.c.h.b16 %v1188
        %v1703 = vunpack.c.l.b16 %v1189
        %v1704 = vunpack.c.h.b16 %v1189
        %v1705 = vunpack.c.l.b16 %v1190
        %v1706 = vunpack.c.h.b16 %v1190
        %v1707 = vunpack.c.l.b16 %v1191
        %v1708 = vunpack.c.h.b16 %v1191
        %v1709 = vunpack.c.l.b16 %v1192
        %v1710 = vunpack.c.h.b16 %v1192
        %v1711 = vunpack.c.l.b16 %v1193
        %v1712 = vunpack.c.h.b16 %v1193
        %v1713 = vunpack.c.l.b16 %v1194
        %v1714 = vunpack.c.h.b16 %v1194
        %v1715 = vunpack.c.l.b16 %v1195
        %v1716 = vunpack.c.h.b16 %v1195
        %v1717 = vunpack.c.l.b16 %v1196
        %v1718 = vunpack.c.h.b16 %v1196
        %v1719 = vunpack.c.l.b16 %v1197
        %v1720 = vunpack.c.h.b16 %v1197
        %v1721 = vunpack.c.l.b16 %v1198
        %v1722 = vunpack.c.h.b16 %v1198
        %v1723 = vunpack.c.l.b16 %v1199
        %v1724 = vunpack.c.h.b16 %v1199
        %v1725 = vunpack.c.l.b16 %v1200
        %v1726 = vunpack.c.h.b16 %v1200
        %v1727 = vunpack.c.l.b16 %v1201
        %v1728 = vunpack.c.h.b16 %v1201
        %v1729 = vunpack.c.l.b16 %v1202
        %v1730 = vunpack.c.h.b16 %v1202
        %v1731 = vunpack.c.l.b16 %v1203
        %v1732 = vunpack.c.h.b16 %v1203
        %v1733 = vunpack.c.l.b16 %v1204
        %v1734 = vunpack.c.h.b16 %v1204
        %v1735 = vunpack.c.l.b16 %v1205
        %v1736 = vunpack.c.h.b16 %v1205
        %v1737 = vunpack.c.l.b16 %v1206
        %v1738 = vunpack.c.h.b16 %v1206
        %v1739 = vunpack.c.l.b16 %v1207
        %v1740 = vunpack.c.h.b16 %v1207
        %v1741 = vunpack.c.l.b16 %v1208
        %v1742 = vunpack.c.h.b16 %v1208
        %v1743 = vunpack.c.l.b16 %v1209
        %v1744 = vunpack.c.h.b16 %v1209
        %v1745 = vunpack.c.l.b16 %v1210
        %v1746 = vunpack.c.h.b16 %v1210
        %v1747 = vunpack.c.l.b16 %v1211
        %v1748 = vunpack.c.h.b16 %v1211
        %v1749 = vunpack.c.l.b16 %v1212
        %v1750 = vunpack.c.h.b16 %v1212
        %v1751 = vunpack.c.l.b16 %v1213
        %v1752 = vunpack.c.h.b16 %v1213
        %v1753 = vunpack.c.l.b16 %v1214
        %v1754 = vunpack.c.h.b16 %v1214
        %v1755 = vunpack.c.l.b16 %v1215
        %v1756 = vunpack.c.h.b16 %v1215
        %v1757 = vunpack.c.l.b16 %v1216
        %v1758 = vunpack.c.h.b16 %v1216
        %v1759 = vunpack.c.l.b16 %v1217
        %v1760 = vunpack.c.h.b16 %v1217
        %v1761 = vunpack.c.l.b16 %v1218
        %v1762 = vunpack.c.h.b16 %v1218
        %v1763 = vpack.c.b16 %v1511, %v1507
        %v1764 = vpack.c.b16 %v1512, %v1508
        %v1765 = vpack.c.b16 %v1513, %v1509
        %v1766 = vpack.c.b16 %v1514, %v1510
        %v1767 = vpack.c.b16 %v1519, %v1515
        %v1768 = vpack.c.b16 %v1520, %v1516
        %v1769 = vpack.c.b16 %v1521, %v1517
        %v1770 = vpack.c.b16 %v1522, %v1518
        %v1771 = vpack.c.b16 %v1527, %v1523
        %v1772 = vpack.c.b16 %v1528, %v1524
        %v1773 = vpack.c.b16 %v1529, %v1525
        %v1774 = vpack.c.b16 %v1530, %v1526
        %v1775 = vpack.c.b16 %v1535, %v1531
        %v1776 = vpack.c.b16 %v1536, %v1532
        %v1777 = vpack.c.b16 %v1537, %v1533
        %v1778 = vpack.c.b16 %v1538, %v1534
        %v1779 = vpack.c.b16 %v1543, %v1539
        %v1780 = vpack.c.b16 %v1544, %v1540
        %v1781 = vpack.c.b16 %v1545, %v1541
        %v1782 = vpack.c.b16 %v1546, %v1542
        %v1783 = vpack.c.b16 %v1551, %v1547
        %v1784 = vpack.c.b16 %v1552, %v1548
        %v1785 = vpack.c.b16 %v1553, %v1549
        %v1786 = vpack.c.b16 %v1554, %v1550
        %v1787 = vpack.c.b16 %v1559, %v1555
        %v1788 = vpack.c.b16 %v1560, %v1556
        %v1789 = vpack.c.b16 %v1561, %v1557
        %v1790 = vpack.c.b16 %v1562, %v1558
        %v1791 = vpack.c.b16 %v1567, %v1563
        %v1792 = vpack.c.b16 %v1568, %v1564
        %v1793 = vpack.c.b16 %v1569, %v1565
        %v1794 = vpack.c.b16 %v1570, %v1566
        %v1795 = vpack.c.b16 %v1575, %v1571
        %v1796 = vpack.c.b16 %v1576, %v1572
        %v1797 = vpack.c.b16 %v1577, %v1573
        %v1798 = vpack.c.b16 %v1578, %v1574
        %v1799 = vpack.c.b16 %v1583, %v1579
        %v1800 = vpack.c.b16 %v1584, %v1580
        %v1801 = vpack.c.b16 %v1585, %v1581
        %v1802 = vpack.c.b16 %v1586, %v1582
        %v1803 = vpack.c.b16 %v1591, %v1587
        %v1804 = vpack.c.b16 %v1592, %v1588
        %v1805 = vpack.c.b16 %v1593, %v1589
        %v1806 = vpack.c.b16 %v1594, %v1590
        %v1807 = vpack.c.b16 %v1599, %v1595
        %v1808 = vpack.c.b16 %v1600, %v1596
        %v1809 = vpack.c.b16 %v1601, %v1597
        %v1810 = vpack.c.b16 %v1602, %v1598
        %v1811 = vpack.c.b16 %v1607, %v1603
        %v1812 = vpack.c.b16 %v1608, %v1604
        %v1813 = vpack.c.b16 %v1609, %v1605
        %v1814 = vpack.c.b16 %v1610, %v1606
        %v1815 = vpack.c.b16 %v1615, %v1611
        %v1816 = vpack.c.b16 %v1616, %v1612
        %v1817 = vpack.c.b16 %v1617, %v1613
        %v1818 = vpack.c.b16 %v1618, %v1614
        %v1819 = vpack.c.b16 %v1623, %v1619
        %v1820 = vpack.c.b16 %v1624, %v1620
        %v1821 = vpack.c.b16 %v1625, %v1621
        %v1822 = vpack.c.b16 %v1626, %v1622
        %v1823 = vpack.c.b16 %v1631, %v1627
        %v1824 = vpack.c.b16 %v1632, %v1628
        %v1825 = vpack.c.b16 %v1633, %v1629
        %v1826 = vpack.c.b16 %v1634, %v1630
        %v1827 = vpack.c.b16 %v1639, %v1635
        %v1828 = vpack.c.b16 %v1640, %v1636
        %v1829 = vpack.c.b16 %v1641, %v1637
        %v1830 = vpack.c.b16 %v1642, %v1638
        %v1831 = vpack.c.b16 %v1647, %v1643
        %v1832 = vpack.c.b16 %v1648, %v1644
        %v1833 = vpack.c.b16 %v1649, %v1645
        %v1834 = vpack.c.b16 %v1650, %v1646
        %v1835 = vpack.c.b16 %v1655, %v1651
        %v1836 = vpack.c.b16 %v1656, %v1652
        %v1837 = vpack.c.b16 %v1657, %v1653
        %v1838 = vpack.c.b16 %v1658, %v1654
        %v1839 = vpack.c.b16 %v1663, %v1659
        %v1840 = vpack.c.b16 %v1664, %v1660
        %v1841 = vpack.c.b16 %v1665, %v1661
        %v1842 = vpack.c.b16 %v1666, %v1662
        %v1843 = vpack.c.b16 %v1671, %v1667
        %v1844 = vpack.c.b16 %v1672, %v1668
        %v1845 = vpack.c.b16 %v1673, %v1669
        %v1846 = vpack.c.b16 %v1674, %v1670
        %v1847 = vpack.c.b16 %v1679, %v1675
        %v1848 = vpack.c.b16 %v1680, %v1676
        %v1849 = vpack.c.b16 %v1681, %v1677
        %v1850 = vpack.c.b16 %v1682, %v1678
        %v1851 = vpack.c.b16 %v1687, %v1683
        %v1852 = vpack.c.b16 %v1688, %v1684
        %v1853 = vpack.c.b16 %v1689, %v1685
        %v1854 = vpack.c.b16 %v1690, %v1686
        %v1855 = vpack.c.b16 %v1695, %v1691
        %v1856 = vpack.c.b16 %v1696, %v1692
        %v1857 = vpack.c.b16 %v1697, %v1693
        %v1858 = vpack.c.b16 %v1698, %v1694
        %v1859 = vpack.c.b16 %v1703, %v1699
        %v1860 = vpack.c.b16 %v1704, %v1700
        %v1861 = vpack.c.b16 %v1705, %v1701
        %v1862 = vpack.c.b16 %v1706, %v1702
        %v1863 = vpack.c.b16 %v1711, %v1707
        %v1864 = vpack.c.b16 %v1712, %v1708
        %v1865 = vpack.c.b16 %v1713, %v1709
        %v1866 = vpack.c.b16 %v1714, %v1710
        %v1867 = vpack.c.b16 %v1719, %v1715
        %v1868 = vpack.c.b16 %v1720, %v1716
        %v1869 = vpack.c.b16 %v1721, %v1717
        %v1870 = vpack.c.b16 %v1722, %v1718
        %v1871 = vpack.c.b16 %v1727, %v1723
        %v1872 = vpack.c.b16 %v1728, %v1724
        %v1873 = vpack.c.b16 %v1729, %v1725
        %v1874 = vpack.c.b16 %v1730, %v1726
        %v1875 = vpack.c.b16 %v1735, %v1731
        %v1876 = vpack.c.b16 %v1736, %v1732
        %v1877 = vpack.c.b16 %v1737, %v1733
        %v1878 = vpack.c.b16 %v1738, %v1734
        %v1879 = vpack.c.b16 %v1743, %v1739
        %v1880 = vpack.c.b16 %v1744, %v1740
        %v1881 = vpack.c.b16 %v1745, %v1741
        %v1882 = vpack.c.b16 %v1746, %v1742
        %v1883 = vpack.c.b16 %v1751, %v1747
        %v1884 = vpack.c.b16 %v1752, %v1748
        %v1885 = vpack.c.b16 %v1753, %v1749
        %v1886 = vpack.c.b16 %v1754, %v1750
        %v1887 = vpack.c.b16 %v1759, %v1755
        %v1888 = vpack.c.b16 %v1760, %v1756
        %v1889 = vpack.c.b16 %v1761, %v1757
        %v1890 = vpack.c.b16 %v1762, %v1758
        %2019 = vmatprep.subr.bf16.mxu0 %v1792
        %2020 = vmatpush1.bf16.msra.mxu0 %v1791
        %2021 = vmatprep.subr.bf16.mxu0 %v1788
        %2022 = vmatpush1.bf16.msra.mxu0 %v1787
        %2023 = vmatprep.subr.bf16.mxu0 %v1784
        %2024 = vmatpush1.bf16.msra.mxu0 %v1783
        %2025 = vmatprep.subr.bf16.mxu0 %v1780
        %2026 = vmatpush1.bf16.msra.mxu0 %v1779
        %2027 = vmatprep.subr.bf16.mxu0 %v1776
        %2028 = vmatpush1.bf16.msra.mxu0 %v1775
        %2029 = vmatprep.subr.bf16.mxu0 %v1772
        %2030 = vmatpush1.bf16.msra.mxu0 %v1771
        %2031 = vmatprep.subr.bf16.mxu0 %v1768
        %2032 = vmatpush1.bf16.msra.mxu0 %v1767
        %2033 = vmatprep.subr.bf16.mxu0 %v1764
        %2034 = vmatpush1.bf16.msra.mxu0 %v1763
        %2035 = vmatprep.subr.bf16.mxu0 %v1824
        %2036 = vmatpush2.bf16.msra.mxu0 %v1823
        %2037 = vmatprep.subr.bf16.mxu0 %v1820
        %2038 = vmatpush2.bf16.msra.mxu0 %v1819
        %2039 = vmatprep.subr.bf16.mxu0 %v1816
        %2040 = vmatpush2.bf16.msra.mxu0 %v1815
        %2041 = vmatprep.subr.bf16.mxu0 %v1812
        %2042 = vmatpush2.bf16.msra.mxu0 %v1811
        %2043 = vmatprep.subr.bf16.mxu0 %v1808
        %2044 = vmatpush2.bf16.msra.mxu0 %v1807
        %2045 = vmatprep.subr.bf16.mxu0 %v1804
        %2046 = vmatpush2.bf16.msra.mxu0 %v1803
        %2047 = vmatprep.subr.bf16.mxu0 %v1800
        %2048 = vmatpush2.bf16.msra.mxu0 %v1799
        %2049 = vmatprep.subr.bf16.mxu0 %v1796
        %2050 = vmatpush2.bf16.msra.mxu0 %v1795
        %2051 = vmatprep.mubr.bf16.mxu0 %v1316
        %2052 = vmatmul.mubr.bf16.gmra.mxu0 %v1315
        %v2053 = vpop.f32.mrf.mxu0
        %v2054 = vadd.f32 %v1040, %v2053
        %v2055 = vpop.f32.mrf.mxu0
        %v2056 = vadd.f32 %v1046, %v2055
        %v2057 = vpop.f32.mrf.mxu0
        %v2058 = vadd.f32 %v1040, %v2057
        %v2059 = vpop.f32.mrf.mxu0
        %v2060 = vadd.f32 %v1046, %v2059
        %2061 = vmatprep.mubr.bf16.mxu0 %v1320
        %2062 = vmatmul.mubr.bf16.gmra.mxu0 %v1319
        %v2063 = vpop.f32.mrf.mxu0
        %v2064 = vadd.f32 %v1040, %v2063
        %v2065 = vpop.f32.mrf.mxu0
        %v2066 = vadd.f32 %v1046, %v2065
        %v2067 = vpop.f32.mrf.mxu0
        %v2068 = vadd.f32 %v1040, %v2067
        %v2069 = vpop.f32.mrf.mxu0
        %v2070 = vadd.f32 %v1046, %v2069
        %2071 = vmatprep.mubr.bf16.mxu0 %v1324
        %2072 = vmatmul.mubr.bf16.gmra.mxu0 %v1323
        %v2073 = vpop.f32.mrf.mxu0
        %v2074 = vadd.f32 %v1040, %v2073
        %v2075 = vpop.f32.mrf.mxu0
        %v2076 = vadd.f32 %v1046, %v2075
        %v2077 = vpop.f32.mrf.mxu0
        %v2078 = vadd.f32 %v1040, %v2077
        %v2079 = vpop.f32.mrf.mxu0
        %v2080 = vadd.f32 %v1046, %v2079
        %2081 = vmatprep.mubr.bf16.mxu0 %v1328
        %2082 = vmatmul.mubr.bf16.gmra.mxu0 %v1327
        %v2083 = vpop.f32.mrf.mxu0
        %v2084 = vadd.f32 %v1040, %v2083
        %v2085 = vpop.f32.mrf.mxu0
        %v2086 = vadd.f32 %v1046, %v2085
        %v2087 = vpop.f32.mrf.mxu0
        %v2088 = vadd.f32 %v1040, %v2087
        %v2089 = vpop.f32.mrf.mxu0
        %v2090 = vadd.f32 %v1046, %v2089
        %2091 = vmatprep.mubr.bf16.mxu0 %v1332
        %2092 = vmatmul.mubr.bf16.gmra.mxu0 %v1331
        %v2093 = vpop.f32.mrf.mxu0
        %v2094 = vadd.f32 %v1040, %v2093
        %v2095 = vpop.f32.mrf.mxu0
        %v2096 = vadd.f32 %v1046, %v2095
        %v2097 = vpop.f32.mrf.mxu0
        %v2098 = vadd.f32 %v1040, %v2097
        %v2099 = vpop.f32.mrf.mxu0
        %v2100 = vadd.f32 %v1046, %v2099
        %2101 = vmatprep.mubr.bf16.mxu0 %v1336
        %2102 = vmatmul.mubr.bf16.gmra.mxu0 %v1335
        %v2103 = vpop.f32.mrf.mxu0
        %v2104 = vadd.f32 %v1040, %v2103
        %v2105 = vpop.f32.mrf.mxu0
        %v2106 = vadd.f32 %v1046, %v2105
        %v2107 = vpop.f32.mrf.mxu0
        %v2108 = vadd.f32 %v1040, %v2107
        %v2109 = vpop.f32.mrf.mxu0
        %v2110 = vadd.f32 %v1046, %v2109
        %2111 = vmatprep.mubr.bf16.mxu0 %v1340
        %2112 = vmatmul.mubr.bf16.gmra.mxu0 %v1339
        %v2113 = vpop.f32.mrf.mxu0
        %v2114 = vadd.f32 %v1040, %v2113
        %v2115 = vpop.f32.mrf.mxu0
        %v2116 = vadd.f32 %v1046, %v2115
        %v2117 = vpop.f32.mrf.mxu0
        %v2118 = vadd.f32 %v1040, %v2117
        %v2119 = vpop.f32.mrf.mxu0
        %v2120 = vadd.f32 %v1046, %v2119
        %2121 = vmatprep.mubr.bf16.mxu0 %v1344
        %2122 = vmatmul.mubr.bf16.gmra.mxu0 %v1343
        %v2123 = vpop.f32.mrf.mxu0
        %v2124 = vadd.f32 %v1040, %v2123
        %v2125 = vpop.f32.mrf.mxu0
        %v2126 = vadd.f32 %v1046, %v2125
        %v2127 = vpop.f32.mrf.mxu0
        %v2128 = vadd.f32 %v1040, %v2127
        %v2129 = vpop.f32.mrf.mxu0
        %v2130 = vadd.f32 %v1046, %v2129
        %2131 = vdwg.mxu0
        %2132 = vmatprep.subr.bf16.mxu0 %v1856
        %2133 = vmatpush1.bf16.msra.mxu0 %v1855
        %2134 = vmatprep.subr.bf16.mxu0 %v1852
        %2135 = vmatpush1.bf16.msra.mxu0 %v1851
        %2136 = vmatprep.subr.bf16.mxu0 %v1848
        %2137 = vmatpush1.bf16.msra.mxu0 %v1847
        %2138 = vmatprep.subr.bf16.mxu0 %v1844
        %2139 = vmatpush1.bf16.msra.mxu0 %v1843
        %2140 = vmatprep.subr.bf16.mxu0 %v1840
        %2141 = vmatpush1.bf16.msra.mxu0 %v1839
        %2142 = vmatprep.subr.bf16.mxu0 %v1836
        %2143 = vmatpush1.bf16.msra.mxu0 %v1835
        %2144 = vmatprep.subr.bf16.mxu0 %v1832
        %2145 = vmatpush1.bf16.msra.mxu0 %v1831
        %2146 = vmatprep.subr.bf16.mxu0 %v1828
        %2147 = vmatpush1.bf16.msra.mxu0 %v1827
        %2148 = vmatprep.subr.bf16.mxu0 %v1888
        %2149 = vmatpush2.bf16.msra.mxu0 %v1887
        %2150 = vmatprep.subr.bf16.mxu0 %v1884
        %2151 = vmatpush2.bf16.msra.mxu0 %v1883
        %2152 = vmatprep.subr.bf16.mxu0 %v1880
        %2153 = vmatpush2.bf16.msra.mxu0 %v1879
        %2154 = vmatprep.subr.bf16.mxu0 %v1876
        %2155 = vmatpush2.bf16.msra.mxu0 %v1875
        %2156 = vmatprep.subr.bf16.mxu0 %v1872
        %2157 = vmatpush2.bf16.msra.mxu0 %v1871
        %2158 = vmatprep.subr.bf16.mxu0 %v1868
        %2159 = vmatpush2.bf16.msra.mxu0 %v1867
        %2160 = vmatprep.subr.bf16.mxu0 %v1864
        %2161 = vmatpush2.bf16.msra.mxu0 %v1863
        %2162 = vmatprep.subr.bf16.mxu0 %v1860
        %2163 = vmatpush2.bf16.msra.mxu0 %v1859
        %2164 = vmatprep.mubr.bf16.mxu0 %v1318
        %2165 = vmatmul.mubr.bf16.gmra.mxu0 %v1317
        %v2166 = vpop.f32.mrf.mxu0
        %v2167 = vadd.f32 %v2054, %v2166
        %v2168 = vpop.f32.mrf.mxu0
        %v2169 = vadd.f32 %v2056, %v2168
        %v2170 = vpop.f32.mrf.mxu0
        %v2171 = vadd.f32 %v2058, %v2170
        %v2172 = vpop.f32.mrf.mxu0
        %v2173 = vadd.f32 %v2060, %v2172
        %2174 = vmatprep.mubr.bf16.mxu0 %v1322
        %2175 = vmatmul.mubr.bf16.gmra.mxu0 %v1321
        %v2176 = vpop.f32.mrf.mxu0
        %v2177 = vadd.f32 %v2064, %v2176
        %v2178 = vpop.f32.mrf.mxu0
        %v2179 = vadd.f32 %v2066, %v2178
        %v2180 = vpop.f32.mrf.mxu0
        %v2181 = vadd.f32 %v2068, %v2180
        %v2182 = vpop.f32.mrf.mxu0
        %v2183 = vadd.f32 %v2070, %v2182
        %2184 = vmatprep.mubr.bf16.mxu0 %v1326
        %2185 = vmatmul.mubr.bf16.gmra.mxu0 %v1325
        %v2186 = vpop.f32.mrf.mxu0
        %v2187 = vadd.f32 %v2074, %v2186
        %v2188 = vpop.f32.mrf.mxu0
        %v2189 = vadd.f32 %v2076, %v2188
        %v2190 = vpop.f32.mrf.mxu0
        %v2191 = vadd.f32 %v2078, %v2190
        %v2192 = vpop.f32.mrf.mxu0
        %v2193 = vadd.f32 %v2080, %v2192
        %2194 = vmatprep.mubr.bf16.mxu0 %v1330
        %2195 = vmatmul.mubr.bf16.gmra.mxu0 %v1329
        %v2196 = vpop.f32.mrf.mxu0
        %v2197 = vadd.f32 %v2084, %v2196
        %v2198 = vpop.f32.mrf.mxu0
        %v2199 = vadd.f32 %v2086, %v2198
        %v2200 = vpop.f32.mrf.mxu0
        %v2201 = vadd.f32 %v2088, %v2200
        %v2202 = vpop.f32.mrf.mxu0
        %v2203 = vadd.f32 %v2090, %v2202
        %2204 = vmatprep.mubr.bf16.mxu0 %v1334
        %2205 = vmatmul.mubr.bf16.gmra.mxu0 %v1333
        %v2206 = vpop.f32.mrf.mxu0
        %v2207 = vadd.f32 %v2094, %v2206
        %v2208 = vpop.f32.mrf.mxu0
        %v2209 = vadd.f32 %v2096, %v2208
        %v2210 = vpop.f32.mrf.mxu0
        %v2211 = vadd.f32 %v2098, %v2210
        %v2212 = vpop.f32.mrf.mxu0
        %v2213 = vadd.f32 %v2100, %v2212
        %2214 = vmatprep.mubr.bf16.mxu0 %v1338
        %2215 = vmatmul.mubr.bf16.gmra.mxu0 %v1337
        %v2216 = vpop.f32.mrf.mxu0
        %v2217 = vadd.f32 %v2104, %v2216
        %v2218 = vpop.f32.mrf.mxu0
        %v2219 = vadd.f32 %v2106, %v2218
        %v2220 = vpop.f32.mrf.mxu0
        %v2221 = vadd.f32 %v2108, %v2220
        %v2222 = vpop.f32.mrf.mxu0
        %v2223 = vadd.f32 %v2110, %v2222
        %2224 = vmatprep.mubr.bf16.mxu0 %v1342
        %2225 = vmatmul.mubr.bf16.gmra.mxu0 %v1341
        %v2226 = vpop.f32.mrf.mxu0
        %v2227 = vadd.f32 %v2114, %v2226
        %v2228 = vpop.f32.mrf.mxu0
        %v2229 = vadd.f32 %v2116, %v2228
        %v2230 = vpop.f32.mrf.mxu0
        %v2231 = vadd.f32 %v2118, %v2230
        %v2232 = vpop.f32.mrf.mxu0
        %v2233 = vadd.f32 %v2120, %v2232
        %2234 = vmatprep.mubr.bf16.mxu0 %v1346
        %2235 = vmatmul.mubr.bf16.gmra.mxu0 %v1345
        %v2236 = vpop.f32.mrf.mxu0
        %v2237 = vadd.f32 %v2124, %v2236
        %v2238 = vpop.f32.mrf.mxu0
        %v2239 = vadd.f32 %v2126, %v2238
        %v2240 = vpop.f32.mrf.mxu0
        %v2241 = vadd.f32 %v2128, %v2240
        %v2242 = vpop.f32.mrf.mxu0
        %v2243 = vadd.f32 %v2130, %v2242
        %2244 = vdwg.mxu0
        %2245 = vmatprep.subr.bf16.mxu0 %v1794
        %2246 = vmatpush1.bf16.msra.mxu0 %v1793
        %2247 = vmatprep.subr.bf16.mxu0 %v1790
        %2248 = vmatpush1.bf16.msra.mxu0 %v1789
        %2249 = vmatprep.subr.bf16.mxu0 %v1786
        %2250 = vmatpush1.bf16.msra.mxu0 %v1785
        %2251 = vmatprep.subr.bf16.mxu0 %v1782
        %2252 = vmatpush1.bf16.msra.mxu0 %v1781
        %2253 = vmatprep.subr.bf16.mxu0 %v1778
        %2254 = vmatpush1.bf16.msra.mxu0 %v1777
        %2255 = vmatprep.subr.bf16.mxu0 %v1774
        %2256 = vmatpush1.bf16.msra.mxu0 %v1773
        %2257 = vmatprep.subr.bf16.mxu0 %v1770
        %2258 = vmatpush1.bf16.msra.mxu0 %v1769
        %2259 = vmatprep.subr.bf16.mxu0 %v1766
        %2260 = vmatpush1.bf16.msra.mxu0 %v1765
        %2261 = vmatprep.subr.bf16.mxu0 %v1826
        %2262 = vmatpush2.bf16.msra.mxu0 %v1825
        %2263 = vmatprep.subr.bf16.mxu0 %v1822
        %2264 = vmatpush2.bf16.msra.mxu0 %v1821
        %2265 = vmatprep.subr.bf16.mxu0 %v1818
        %2266 = vmatpush2.bf16.msra.mxu0 %v1817
        %2267 = vmatprep.subr.bf16.mxu0 %v1814
        %2268 = vmatpush2.bf16.msra.mxu0 %v1813
        %2269 = vmatprep.subr.bf16.mxu0 %v1810
        %2270 = vmatpush2.bf16.msra.mxu0 %v1809
        %2271 = vmatprep.subr.bf16.mxu0 %v1806
        %2272 = vmatpush2.bf16.msra.mxu0 %v1805
        %2273 = vmatprep.subr.bf16.mxu0 %v1802
        %2274 = vmatpush2.bf16.msra.mxu0 %v1801
        %2275 = vmatprep.subr.bf16.mxu0 %v1798
        %2276 = vmatpush2.bf16.msra.mxu0 %v1797
        %2277 = vmatprep.mubr.bf16.mxu0 %v1316
        %2278 = vmatmul.mubr.bf16.gmra.mxu0 %v1315
        %v2279 = vpop.f32.mrf.mxu0
        %v2280 = vadd.f32 %v1052, %v2279
        %v2281 = vpop.f32.mrf.mxu0
        %v2282 = vadd.f32 %v1058, %v2281
        %v2283 = vpop.f32.mrf.mxu0
        %v2284 = vadd.f32 %v1052, %v2283
        %v2285 = vpop.f32.mrf.mxu0
        %v2286 = vadd.f32 %v1058, %v2285
        %2287 = vmatprep.mubr.bf16.mxu0 %v1320
        %2288 = vmatmul.mubr.bf16.gmra.mxu0 %v1319
        %v2289 = vpop.f32.mrf.mxu0
        %v2290 = vadd.f32 %v1052, %v2289
        %v2291 = vpop.f32.mrf.mxu0
        %v2292 = vadd.f32 %v1058, %v2291
        %v2293 = vpop.f32.mrf.mxu0
        %v2294 = vadd.f32 %v1052, %v2293
        %v2295 = vpop.f32.mrf.mxu0
        %v2296 = vadd.f32 %v1058, %v2295
        %2297 = vmatprep.mubr.bf16.mxu0 %v1324
        %2298 = vmatmul.mubr.bf16.gmra.mxu0 %v1323
        %v2299 = vpop.f32.mrf.mxu0
        %v2300 = vadd.f32 %v1052, %v2299
        %v2301 = vpop.f32.mrf.mxu0
        %v2302 = vadd.f32 %v1058, %v2301
        %v2303 = vpop.f32.mrf.mxu0
        %v2304 = vadd.f32 %v1052, %v2303
        %v2305 = vpop.f32.mrf.mxu0
        %v2306 = vadd.f32 %v1058, %v2305
        %2307 = vmatprep.mubr.bf16.mxu0 %v1328
        %2308 = vmatmul.mubr.bf16.gmra.mxu0 %v1327
        %v2309 = vpop.f32.mrf.mxu0
        %v2310 = vadd.f32 %v1052, %v2309
        %v2311 = vpop.f32.mrf.mxu0
        %v2312 = vadd.f32 %v1058, %v2311
        %v2313 = vpop.f32.mrf.mxu0
        %v2314 = vadd.f32 %v1052, %v2313
        %v2315 = vpop.f32.mrf.mxu0
        %v2316 = vadd.f32 %v1058, %v2315
        %2317 = vmatprep.mubr.bf16.mxu0 %v1332
        %2318 = vmatmul.mubr.bf16.gmra.mxu0 %v1331
        %v2319 = vpop.f32.mrf.mxu0
        %v2320 = vadd.f32 %v1052, %v2319
        %v2321 = vpop.f32.mrf.mxu0
        %v2322 = vadd.f32 %v1058, %v2321
        %v2323 = vpop.f32.mrf.mxu0
        %v2324 = vadd.f32 %v1052, %v2323
        %v2325 = vpop.f32.mrf.mxu0
        %v2326 = vadd.f32 %v1058, %v2325
        %2327 = vmatprep.mubr.bf16.mxu0 %v1336
        %2328 = vmatmul.mubr.bf16.gmra.mxu0 %v1335
        %v2329 = vpop.f32.mrf.mxu0
        %v2330 = vadd.f32 %v1052, %v2329
        %v2331 = vpop.f32.mrf.mxu0
        %v2332 = vadd.f32 %v1058, %v2331
        %v2333 = vpop.f32.mrf.mxu0
        %v2334 = vadd.f32 %v1052, %v2333
        %v2335 = vpop.f32.mrf.mxu0
        %v2336 = vadd.f32 %v1058, %v2335
        %2337 = vmatprep.mubr.bf16.mxu0 %v1340
        %2338 = vmatmul.mubr.bf16.gmra.mxu0 %v1339
        %v2339 = vpop.f32.mrf.mxu0
        %v2340 = vadd.f32 %v1052, %v2339
        %v2341 = vpop.f32.mrf.mxu0
        %v2342 = vadd.f32 %v1058, %v2341
        %v2343 = vpop.f32.mrf.mxu0
        %v2344 = vadd.f32 %v1052, %v2343
        %v2345 = vpop.f32.mrf.mxu0
        %v2346 = vadd.f32 %v1058, %v2345
        %2347 = vmatprep.mubr.bf16.mxu0 %v1344
        %2348 = vmatmul.mubr.bf16.gmra.mxu0 %v1343
        %v2349 = vpop.f32.mrf.mxu0
        %v2350 = vadd.f32 %v1052, %v2349
        %v2351 = vpop.f32.mrf.mxu0
        %v2352 = vadd.f32 %v1058, %v2351
        %v2353 = vpop.f32.mrf.mxu0
        %v2354 = vadd.f32 %v1052, %v2353
        %v2355 = vpop.f32.mrf.mxu0
        %v2356 = vadd.f32 %v1058, %v2355
        %2357 = vdwg.mxu0
        %2358 = vmatprep.subr.bf16.mxu0 %v1858
        %2359 = vmatpush1.bf16.msra.mxu0 %v1857
        %2360 = vmatprep.subr.bf16.mxu0 %v1854
        %2361 = vmatpush1.bf16.msra.mxu0 %v1853
        %2362 = vmatprep.subr.bf16.mxu0 %v1850
        %2363 = vmatpush1.bf16.msra.mxu0 %v1849
        %2364 = vmatprep.subr.bf16.mxu0 %v1846
        %2365 = vmatpush1.bf16.msra.mxu0 %v1845
        %2366 = vmatprep.subr.bf16.mxu0 %v1842
        %2367 = vmatpush1.bf16.msra.mxu0 %v1841
        %2368 = vmatprep.subr.bf16.mxu0 %v1838
        %2369 = vmatpush1.bf16.msra.mxu0 %v1837
        %2370 = vmatprep.subr.bf16.mxu0 %v1834
        %2371 = vmatpush1.bf16.msra.mxu0 %v1833
        %2372 = vmatprep.subr.bf16.mxu0 %v1830
        %2373 = vmatpush1.bf16.msra.mxu0 %v1829
        %2374 = vmatprep.subr.bf16.mxu0 %v1890
        %2375 = vmatpush2.bf16.msra.mxu0 %v1889
        %2376 = vmatprep.subr.bf16.mxu0 %v1886
        %2377 = vmatpush2.bf16.msra.mxu0 %v1885
        %2378 = vmatprep.subr.bf16.mxu0 %v1882
        %2379 = vmatpush2.bf16.msra.mxu0 %v1881
        %2380 = vmatprep.subr.bf16.mxu0 %v1878
        %2381 = vmatpush2.bf16.msra.mxu0 %v1877
        %2382 = vmatprep.subr.bf16.mxu0 %v1874
        %2383 = vmatpush2.bf16.msra.mxu0 %v1873
        %2384 = vmatprep.subr.bf16.mxu0 %v1870
        %2385 = vmatpush2.bf16.msra.mxu0 %v1869
        %2386 = vmatprep.subr.bf16.mxu0 %v1866
        %2387 = vmatpush2.bf16.msra.mxu0 %v1865
        %2388 = vmatprep.subr.bf16.mxu0 %v1862
        %2389 = vmatpush2.bf16.msra.mxu0 %v1861
        %2390 = vmatprep.mubr.bf16.mxu0 %v1318
        %2391 = vmatmul.mubr.bf16.gmra.mxu0 %v1317
        %v2392 = vpop.f32.mrf.mxu0
        %v2393 = vadd.f32 %v2280, %v2392
        %v2394 = vpop.f32.mrf.mxu0
        %v2395 = vadd.f32 %v2282, %v2394
        %v2396 = vpop.f32.mrf.mxu0
        %v2397 = vadd.f32 %v2284, %v2396
        %v2398 = vpop.f32.mrf.mxu0
        %v2399 = vadd.f32 %v2286, %v2398
        %2400 = vmatprep.mubr.bf16.mxu0 %v1322
        %2401 = vmatmul.mubr.bf16.gmra.mxu0 %v1321
        %v2402 = vpop.f32.mrf.mxu0
        %v2403 = vadd.f32 %v2290, %v2402
        %v2404 = vpop.f32.mrf.mxu0
        %v2405 = vadd.f32 %v2292, %v2404
        %v2406 = vpop.f32.mrf.mxu0
        %v2407 = vadd.f32 %v2294, %v2406
        %v2408 = vpop.f32.mrf.mxu0
        %v2409 = vadd.f32 %v2296, %v2408
        %2410 = vmatprep.mubr.bf16.mxu0 %v1326
        %2411 = vmatmul.mubr.bf16.gmra.mxu0 %v1325
        %v2412 = vpop.f32.mrf.mxu0
        %v2413 = vadd.f32 %v2300, %v2412
        %v2414 = vpop.f32.mrf.mxu0
        %v2415 = vadd.f32 %v2302, %v2414
        %v2416 = vpop.f32.mrf.mxu0
        %v2417 = vadd.f32 %v2304, %v2416
        %v2418 = vpop.f32.mrf.mxu0
        %v2419 = vadd.f32 %v2306, %v2418
        %2420 = vmatprep.mubr.bf16.mxu0 %v1330
        %2421 = vmatmul.mubr.bf16.gmra.mxu0 %v1329
        %v2422 = vpop.f32.mrf.mxu0
        %v2423 = vadd.f32 %v2310, %v2422
        %v2424 = vpop.f32.mrf.mxu0
        %v2425 = vadd.f32 %v2312, %v2424
        %v2426 = vpop.f32.mrf.mxu0
        %v2427 = vadd.f32 %v2314, %v2426
        %v2428 = vpop.f32.mrf.mxu0
        %v2429 = vadd.f32 %v2316, %v2428
        %2430 = vmatprep.mubr.bf16.mxu0 %v1334
        %2431 = vmatmul.mubr.bf16.gmra.mxu0 %v1333
        %v2432 = vpop.f32.mrf.mxu0
        %v2433 = vadd.f32 %v2320, %v2432
        %v2434 = vpop.f32.mrf.mxu0
        %v2435 = vadd.f32 %v2322, %v2434
        %v2436 = vpop.f32.mrf.mxu0
        %v2437 = vadd.f32 %v2324, %v2436
        %v2438 = vpop.f32.mrf.mxu0
        %v2439 = vadd.f32 %v2326, %v2438
        %2440 = vmatprep.mubr.bf16.mxu0 %v1338
        %2441 = vmatmul.mubr.bf16.gmra.mxu0 %v1337
        %v2442 = vpop.f32.mrf.mxu0
        %v2443 = vadd.f32 %v2330, %v2442
        %v2444 = vpop.f32.mrf.mxu0
        %v2445 = vadd.f32 %v2332, %v2444
        %v2446 = vpop.f32.mrf.mxu0
        %v2447 = vadd.f32 %v2334, %v2446
        %v2448 = vpop.f32.mrf.mxu0
        %v2449 = vadd.f32 %v2336, %v2448
        %2450 = vmatprep.mubr.bf16.mxu0 %v1342
        %2451 = vmatmul.mubr.bf16.gmra.mxu0 %v1341
        %v2452 = vpop.f32.mrf.mxu0
        %v2453 = vadd.f32 %v2340, %v2452
        %v2454 = vpop.f32.mrf.mxu0
        %v2455 = vadd.f32 %v2342, %v2454
        %v2456 = vpop.f32.mrf.mxu0
        %v2457 = vadd.f32 %v2344, %v2456
        %v2458 = vpop.f32.mrf.mxu0
        %v2459 = vadd.f32 %v2346, %v2458
        %2460 = vmatprep.mubr.bf16.mxu0 %v1346
        %2461 = vmatmul.mubr.bf16.gmra.mxu0 %v1345
        %v2462 = vpop.f32.mrf.mxu0
        %v2463 = vadd.f32 %v2350, %v2462
        %v2464 = vpop.f32.mrf.mxu0
        %v2465 = vadd.f32 %v2352, %v2464
        %v2466 = vpop.f32.mrf.mxu0
        %v2467 = vadd.f32 %v2354, %v2466
        %v2468 = vpop.f32.mrf.mxu0
        %v2469 = vadd.f32 %v2356, %v2468
        %2470 = vdwg.mxu0
        %v2471 = vmax.f32 %v2167, 0.0
        %v2472 = vmax.f32 %v2169, 0.0
        %v2473 = vmax.f32 %v2393, 0.0
        %v2474 = vmax.f32 %v2395, 0.0
        %v2475 = vmax.f32 %v2171, 0.0
        %v2476 = vmax.f32 %v2173, 0.0
        %v2477 = vmax.f32 %v2397, 0.0
        %v2478 = vmax.f32 %v2399, 0.0
        %v2479 = vmax.f32 %v2177, 0.0
        %v2480 = vmax.f32 %v2179, 0.0
        %v2481 = vmax.f32 %v2403, 0.0
        %v2482 = vmax.f32 %v2405, 0.0
        %v2483 = vmax.f32 %v2181, 0.0
        %v2484 = vmax.f32 %v2183, 0.0
        %v2485 = vmax.f32 %v2407, 0.0
        %v2486 = vmax.f32 %v2409, 0.0
        %v2487 = vmax.f32 %v2187, 0.0
        %v2488 = vmax.f32 %v2189, 0.0
        %v2489 = vmax.f32 %v2413, 0.0
        %v2490 = vmax.f32 %v2415, 0.0
        %v2491 = vmax.f32 %v2191, 0.0
        %v2492 = vmax.f32 %v2193, 0.0
        %v2493 = vmax.f32 %v2417, 0.0
        %v2494 = vmax.f32 %v2419, 0.0
        %v2495 = vmax.f32 %v2197, 0.0
        %v2496 = vmax.f32 %v2199, 0.0
        %v2497 = vmax.f32 %v2423, 0.0
        %v2498 = vmax.f32 %v2425, 0.0
        %v2499 = vmax.f32 %v2201, 0.0
        %v2500 = vmax.f32 %v2203, 0.0
        %v2501 = vmax.f32 %v2427, 0.0
        %v2502 = vmax.f32 %v2429, 0.0
        %v2503 = vmax.f32 %v2207, 0.0
        %v2504 = vmax.f32 %v2209, 0.0
        %v2505 = vmax.f32 %v2433, 0.0
        %v2506 = vmax.f32 %v2435, 0.0
        %v2507 = vmax.f32 %v2211, 0.0
        %v2508 = vmax.f32 %v2213, 0.0
        %v2509 = vmax.f32 %v2437, 0.0
        %v2510 = vmax.f32 %v2439, 0.0
        %v2511 = vmax.f32 %v2217, 0.0
        %v2512 = vmax.f32 %v2219, 0.0
        %v2513 = vmax.f32 %v2443, 0.0
        %v2514 = vmax.f32 %v2445, 0.0
        %v2515 = vmax.f32 %v2221, 0.0
        %v2516 = vmax.f32 %v2223, 0.0
        %v2517 = vmax.f32 %v2447, 0.0
        %v2518 = vmax.f32 %v2449, 0.0
        %v2519 = vmax.f32 %v2227, 0.0
        %v2520 = vmax.f32 %v2229, 0.0
        %v2521 = vmax.f32 %v2453, 0.0
        %v2522 = vmax.f32 %v2455, 0.0
        %v2523 = vmax.f32 %v2231, 0.0
        %v2524 = vmax.f32 %v2233, 0.0
        %v2525 = vmax.f32 %v2457, 0.0
        %v2526 = vmax.f32 %v2459, 0.0
        %v2527 = vmax.f32 %v2237, 0.0
        %v2528 = vmax.f32 %v2239, 0.0
        %v2529 = vmax.f32 %v2463, 0.0
        %v2530 = vmax.f32 %v2465, 0.0
        %v2531 = vmax.f32 %v2241, 0.0
        %v2532 = vmax.f32 %v2243, 0.0
        %v2533 = vmax.f32 %v2467, 0.0
        %v2534 = vmax.f32 %v2469, 0.0
        %v2535 = vpack.c.bf16 %v2475, %v2471
        %v2536 = vpack.c.bf16 %v2476, %v2472
        %v2537 = vpack.c.bf16 %v2477, %v2473
        %v2538 = vpack.c.bf16 %v2478, %v2474
        %v2539 = vpack.c.bf16 %v2483, %v2479
        %v2540 = vpack.c.bf16 %v2484, %v2480
        %v2541 = vpack.c.bf16 %v2485, %v2481
        %v2542 = vpack.c.bf16 %v2486, %v2482
        %v2543 = vpack.c.bf16 %v2491, %v2487
        %v2544 = vpack.c.bf16 %v2492, %v2488
        %v2545 = vpack.c.bf16 %v2493, %v2489
        %v2546 = vpack.c.bf16 %v2494, %v2490
        %v2547 = vpack.c.bf16 %v2499, %v2495
        %v2548 = vpack.c.bf16 %v2500, %v2496
        %v2549 = vpack.c.bf16 %v2501, %v2497
        %v2550 = vpack.c.bf16 %v2502, %v2498
        %v2551 = vpack.c.bf16 %v2507, %v2503
        %v2552 = vpack.c.bf16 %v2508, %v2504
        %v2553 = vpack.c.bf16 %v2509, %v2505
        %v2554 = vpack.c.bf16 %v2510, %v2506
        %v2555 = vpack.c.bf16 %v2515, %v2511
        %v2556 = vpack.c.bf16 %v2516, %v2512
        %v2557 = vpack.c.bf16 %v2517, %v2513
        %v2558 = vpack.c.bf16 %v2518, %v2514
        %v2559 = vpack.c.bf16 %v2523, %v2519
        %v2560 = vpack.c.bf16 %v2524, %v2520
        %v2561 = vpack.c.bf16 %v2525, %v2521
        %v2562 = vpack.c.bf16 %v2526, %v2522
        %v2563 = vpack.c.bf16 %v2531, %v2527
        %v2564 = vpack.c.bf16 %v2532, %v2528
        %v2565 = vpack.c.bf16 %v2533, %v2529
        %v2566 = vpack.c.bf16 %v2534, %v2530
        %v2599 = vunpack.c.l.b16 %v2535
        %v2600 = vunpack.c.l.b16 %v2536
        %v2601 = vunpack.c.l.b16 %v2537
        %v2602 = vunpack.c.l.b16 %v2538
        %v2603 = vunpack.c.h.b16 %v2535
        %v2604 = vunpack.c.h.b16 %v2536
        %v2605 = vunpack.c.h.b16 %v2537
        %v2606 = vunpack.c.h.b16 %v2538
        %v2607 = vunpack.c.l.b16 %v2539
        %v2608 = vunpack.c.l.b16 %v2540
        %v2609 = vunpack.c.l.b16 %v2541
        %v2610 = vunpack.c.l.b16 %v2542
        %v2611 = vunpack.c.h.b16 %v2539
        %v2612 = vunpack.c.h.b16 %v2540
        %v2613 = vunpack.c.h.b16 %v2541
        %v2614 = vunpack.c.h.b16 %v2542
        %v2615 = vunpack.c.l.b16 %v2543
        %v2616 = vunpack.c.l.b16 %v2544
        %v2617 = vunpack.c.l.b16 %v2545
        %v2618 = vunpack.c.l.b16 %v2546
        %v2619 = vunpack.c.h.b16 %v2543
        %v2620 = vunpack.c.h.b16 %v2544
        %v2621 = vunpack.c.h.b16 %v2545
        %v2622 = vunpack.c.h.b16 %v2546
        %v2623 = vunpack.c.l.b16 %v2547
        %v2624 = vunpack.c.l.b16 %v2548
        %v2625 = vunpack.c.l.b16 %v2549
        %v2626 = vunpack.c.l.b16 %v2550
        %v2627 = vunpack.c.h.b16 %v2547
        %v2628 = vunpack.c.h.b16 %v2548
        %v2629 = vunpack.c.h.b16 %v2549
        %v2630 = vunpack.c.h.b16 %v2550
        %v2631 = vunpack.c.l.b16 %v2551
        %v2632 = vunpack.c.l.b16 %v2552
        %v2633 = vunpack.c.l.b16 %v2553
        %v2634 = vunpack.c.l.b16 %v2554
        %v2635 = vunpack.c.h.b16 %v2551
        %v2636 = vunpack.c.h.b16 %v2552
        %v2637 = vunpack.c.h.b16 %v2553
        %v2638 = vunpack.c.h.b16 %v2554
        %v2639 = vunpack.c.l.b16 %v2555
        %v2640 = vunpack.c.l.b16 %v2556
        %v2641 = vunpack.c.l.b16 %v2557
        %v2642 = vunpack.c.l.b16 %v2558
        %v2643 = vunpack.c.h.b16 %v2555
        %v2644 = vunpack.c.h.b16 %v2556
        %v2645 = vunpack.c.h.b16 %v2557
        %v2646 = vunpack.c.h.b16 %v2558
        %v2647 = vunpack.c.l.b16 %v2559
        %v2648 = vunpack.c.l.b16 %v2560
        %v2649 = vunpack.c.l.b16 %v2561
        %v2650 = vunpack.c.l.b16 %v2562
        %v2651 = vunpack.c.h.b16 %v2559
        %v2652 = vunpack.c.h.b16 %v2560
        %v2653 = vunpack.c.h.b16 %v2561
        %v2654 = vunpack.c.h.b16 %v2562
        %v2655 = vunpack.c.l.b16 %v2563
        %v2656 = vunpack.c.l.b16 %v2564
        %v2657 = vunpack.c.l.b16 %v2565
        %v2658 = vunpack.c.l.b16 %v2566
        %v2659 = vunpack.c.h.b16 %v2563
        %v2660 = vunpack.c.h.b16 %v2564
        %v2661 = vunpack.c.h.b16 %v2565
        %v2662 = vunpack.c.h.b16 %v2566
        %v2663 = vpack.c.b16 %v2600, %v2599
        %v2664 = vpack.c.b16 %v2602, %v2601
        %v2665 = vpack.c.b16 %v2604, %v2603
        %v2666 = vpack.c.b16 %v2606, %v2605
        %v2667 = vpack.c.b16 %v2608, %v2607
        %v2668 = vpack.c.b16 %v2610, %v2609
        %v2669 = vpack.c.b16 %v2612, %v2611
        %v2670 = vpack.c.b16 %v2614, %v2613
        %v2671 = vpack.c.b16 %v2616, %v2615
        %v2672 = vpack.c.b16 %v2618, %v2617
        %v2673 = vpack.c.b16 %v2620, %v2619
        %v2674 = vpack.c.b16 %v2622, %v2621
        %v2675 = vpack.c.b16 %v2624, %v2623
        %v2676 = vpack.c.b16 %v2626, %v2625
        %v2677 = vpack.c.b16 %v2628, %v2627
        %v2678 = vpack.c.b16 %v2630, %v2629
        %v2679 = vpack.c.b16 %v2632, %v2631
        %v2680 = vpack.c.b16 %v2634, %v2633
        %v2681 = vpack.c.b16 %v2636, %v2635
        %v2682 = vpack.c.b16 %v2638, %v2637
        %v2683 = vpack.c.b16 %v2640, %v2639
        %v2684 = vpack.c.b16 %v2642, %v2641
        %v2685 = vpack.c.b16 %v2644, %v2643
        %v2686 = vpack.c.b16 %v2646, %v2645
        %v2687 = vpack.c.b16 %v2648, %v2647
        %v2688 = vpack.c.b16 %v2650, %v2649
        %v2689 = vpack.c.b16 %v2652, %v2651
        %v2690 = vpack.c.b16 %v2654, %v2653
        %v2691 = vpack.c.b16 %v2656, %v2655
        %v2692 = vpack.c.b16 %v2658, %v2657
        %v2693 = vpack.c.b16 %v2660, %v2659
        %v2694 = vpack.c.b16 %v2662, %v2661
        %2727 = vst [vmem:[#allocation2] sm:$0xff] %v2663
        %2728 = vst [vmem:[#allocation2 + $0x8] sm:$0xff] %v2664
        %2729 = vst [vmem:[#allocation2 + $0x10] sm:$0xff] %v2665
        %2730 = vst [vmem:[#allocation2 + $0x18] sm:$0xff] %v2666
        %2731 = vst [vmem:[#allocation2 + $0x20] sm:$0xff] %v2667
        %2732 = vst [vmem:[#allocation2 + $0x28] sm:$0xff] %v2668
        %2733 = vst [vmem:[#allocation2 + $0x30] sm:$0xff] %v2669
        %2734 = vst [vmem:[#allocation2 + $0x38] sm:$0xff] %v2670
        %2735 = vst [vmem:[#allocation2 + $0x40] sm:$0xff] %v2671
        %2736 = vst [vmem:[#allocation2 + $0x48] sm:$0xff] %v2672
        %2737 = vst [vmem:[#allocation2 + $0x50] sm:$0xff] %v2673
        %2738 = vst [vmem:[#allocation2 + $0x58] sm:$0xff] %v2674
        %2739 = vst [vmem:[#allocation2 + $0x60] sm:$0xff] %v2675
        %2740 = vst [vmem:[#allocation2 + $0x68] sm:$0xff] %v2676
        %2741 = vst [vmem:[#allocation2 + $0x70] sm:$0xff] %v2677
        %2742 = vst [vmem:[#allocation2 + $0x78] sm:$0xff] %v2678
        %2743 = vst [vmem:[#allocation2 + $0x80] sm:$0xff] %v2679
        %2744 = vst [vmem:[#allocation2 + $0x88] sm:$0xff] %v2680
        %2745 = vst [vmem:[#allocation2 + $0x90] sm:$0xff] %v2681
        %2746 = vst [vmem:[#allocation2 + $0x98] sm:$0xff] %v2682
        %2747 = vst [vmem:[#allocation2 + $0xa0] sm:$0xff] %v2683
        %2748 = vst [vmem:[#allocation2 + $0xa8] sm:$0xff] %v2684
        %2749 = vst [vmem:[#allocation2 + $0xb0] sm:$0xff] %v2685
        %2750 = vst [vmem:[#allocation2 + $0xb8] sm:$0xff] %v2686
        %2751 = vst [vmem:[#allocation2 + $0xc0] sm:$0xff] %v2687
        %2752 = vst [vmem:[#allocation2 + $0xc8] sm:$0xff] %v2688
        %2753 = vst [vmem:[#allocation2 + $0xd0] sm:$0xff] %v2689
        %2754 = vst [vmem:[#allocation2 + $0xd8] sm:$0xff] %v2690
        %2755 = vst [vmem:[#allocation2 + $0xe0] sm:$0xff] %v2691
        %2756 = vst [vmem:[#allocation2 + $0xe8] sm:$0xff] %v2692
        %2757 = vst [vmem:[#allocation2 + $0xf0] sm:$0xff] %v2693
        %2758 = vst [vmem:[#allocation2 + $0xf8] sm:$0xff] %v2694
        %p2759 = scmp.eq.s32.totalorder %s26, 3
        // Predicated region
        $region61: #{dqn_forward.1} parent=39 // pred_check
          %p2760 = pneg %p2759
        $region62: #{dqn_forward.1} parent=39 // pred_check_branch
          %2762 = sbr.rel (%p2760) target = $region64
        $region63: #{dqn_forward.1} parent=39 // pred_region
          %v2763 = vld [vmem:[#allocation2] sm:$0xff]
          %v2764 = vld [vmem:[#allocation2 + $0x8] sm:$0xff]
          %v2765 = vld [vmem:[#allocation2 + $0x10] sm:$0xff]
          %v2766 = vld [vmem:[#allocation2 + $0x18] sm:$0xff]
          %v2767 = vld [vmem:[#allocation2 + $0x20] sm:$0xff]
          %v2768 = vld [vmem:[#allocation2 + $0x28] sm:$0xff]
          %v2769 = vld [vmem:[#allocation2 + $0x30] sm:$0xff]
          %v2770 = vld [vmem:[#allocation2 + $0x38] sm:$0xff]
          %v2771 = vld [vmem:[#allocation2 + $0x40] sm:$0xff]
          %v2772 = vld [vmem:[#allocation2 + $0x48] sm:$0xff]
          %v2773 = vld [vmem:[#allocation2 + $0x50] sm:$0xff]
          %v2774 = vld [vmem:[#allocation2 + $0x58] sm:$0xff]
          %v2775 = vld [vmem:[#allocation2 + $0x60] sm:$0xff]
          %v2776 = vld [vmem:[#allocation2 + $0x68] sm:$0xff]
          %v2777 = vld [vmem:[#allocation2 + $0x70] sm:$0xff]
          %v2778 = vld [vmem:[#allocation2 + $0x78] sm:$0xff]
          %v2779 = vld [vmem:[#allocation2 + $0x80] sm:$0xff]
          %v2780 = vld [vmem:[#allocation2 + $0x88] sm:$0xff]
          %v2781 = vld [vmem:[#allocation2 + $0x90] sm:$0xff]
          %v2782 = vld [vmem:[#allocation2 + $0x98] sm:$0xff]
          %v2783 = vld [vmem:[#allocation2 + $0xa0] sm:$0xff]
          %v2784 = vld [vmem:[#allocation2 + $0xa8] sm:$0xff]
          %v2785 = vld [vmem:[#allocation2 + $0xb0] sm:$0xff]
          %v2786 = vld [vmem:[#allocation2 + $0xb8] sm:$0xff]
          %v2787 = vld [vmem:[#allocation2 + $0xc0] sm:$0xff]
          %v2788 = vld [vmem:[#allocation2 + $0xc8] sm:$0xff]
          %v2789 = vld [vmem:[#allocation2 + $0xd0] sm:$0xff]
          %v2790 = vld [vmem:[#allocation2 + $0xd8] sm:$0xff]
          %v2791 = vld [vmem:[#allocation2 + $0xe0] sm:$0xff]
          %v2792 = vld [vmem:[#allocation2 + $0xe8] sm:$0xff]
          %v2793 = vld [vmem:[#allocation2 + $0xf0] sm:$0xff]
          %v2794 = vld [vmem:[#allocation2 + $0xf8] sm:$0xff]
          %v2795 = vld [vmem:[#allocation7] sm:$0xf]
          %v2796 = vld [vmem:[#allocation7 + $0x4] sm:$0xf]
          %v2797 = vld [vmem:[#allocation7 + $0x8] sm:$0xf]
          %v2798 = vld [vmem:[#allocation7 + $0xc] sm:$0xf]
          %v2799 = vld [vmem:[#allocation7 + $0x10] sm:$0xf]
          %v2800 = vld [vmem:[#allocation7 + $0x14] sm:$0xf]
          %v2801 = vld [vmem:[#allocation7 + $0x18] sm:$0xf]
          %v2802 = vld [vmem:[#allocation7 + $0x1c] sm:$0xf]
          %v2803 = vld [vmem:[#allocation7 + $0x20] sm:$0xf]
          %v2804 = vld [vmem:[#allocation7 + $0x24] sm:$0xf]
          %v2805 = vld [vmem:[#allocation7 + $0x28] sm:$0xf]
          %v2806 = vld [vmem:[#allocation7 + $0x2c] sm:$0xf]
          %v2807 = vld [vmem:[#allocation7 + $0x30] sm:$0xf]
          %v2808 = vld [vmem:[#allocation7 + $0x34] sm:$0xf]
          %v2809 = vld [vmem:[#allocation7 + $0x38] sm:$0xf]
          %v2810 = vld [vmem:[#allocation7 + $0x3c] sm:$0xf]
          %v2811 = vld [vmem:[#allocation7 + $0x40] sm:$0xf]
          %v2812 = vld [vmem:[#allocation7 + $0x44] sm:$0xf]
          %v2813 = vld [vmem:[#allocation7 + $0x48] sm:$0xf]
          %v2814 = vld [vmem:[#allocation7 + $0x4c] sm:$0xf]
          %v2815 = vld [vmem:[#allocation7 + $0x50] sm:$0xf]
          %v2816 = vld [vmem:[#allocation7 + $0x54] sm:$0xf]
          %v2817 = vld [vmem:[#allocation7 + $0x58] sm:$0xf]
          %v2818 = vld [vmem:[#allocation7 + $0x5c] sm:$0xf]
          %v2819 = vld [vmem:[#allocation7 + $0x60] sm:$0xf]
          %v2820 = vld [vmem:[#allocation7 + $0x64] sm:$0xf]
          %v2821 = vld [vmem:[#allocation7 + $0x68] sm:$0xf]
          %v2822 = vld [vmem:[#allocation7 + $0x6c] sm:$0xf]
          %v2823 = vld [vmem:[#allocation7 + $0x70] sm:$0xf]
          %v2824 = vld [vmem:[#allocation7 + $0x74] sm:$0xf]
          %v2825 = vld [vmem:[#allocation7 + $0x78] sm:$0xf]
          %v2826 = vld [vmem:[#allocation7 + $0x7c] sm:$0xf]
          %v2827 = vld [vmem:[#allocation7 + $0x80] sm:$0xf]
          %v2828 = vld [vmem:[#allocation7 + $0x84] sm:$0xf]
          %v2829 = vld [vmem:[#allocation7 + $0x88] sm:$0xf]
          %v2830 = vld [vmem:[#allocation7 + $0x8c] sm:$0xf]
          %v2831 = vld [vmem:[#allocation7 + $0x90] sm:$0xf]
          %v2832 = vld [vmem:[#allocation7 + $0x94] sm:$0xf]
          %v2833 = vld [vmem:[#allocation7 + $0x98] sm:$0xf]
          %v2834 = vld [vmem:[#allocation7 + $0x9c] sm:$0xf]
          %v2835 = vld [vmem:[#allocation7 + $0xa0] sm:$0xf]
          %v2836 = vld [vmem:[#allocation7 + $0xa4] sm:$0xf]
          %v2837 = vld [vmem:[#allocation7 + $0xa8] sm:$0xf]
          %v2838 = vld [vmem:[#allocation7 + $0xac] sm:$0xf]
          %v2839 = vld [vmem:[#allocation7 + $0xb0] sm:$0xf]
          %v2840 = vld [vmem:[#allocation7 + $0xb4] sm:$0xf]
          %v2841 = vld [vmem:[#allocation7 + $0xb8] sm:$0xf]
          %v2842 = vld [vmem:[#allocation7 + $0xbc] sm:$0xf]
          %v2843 = vld [vmem:[#allocation7 + $0xc0] sm:$0xf]
          %v2844 = vld [vmem:[#allocation7 + $0xc4] sm:$0xf]
          %v2845 = vld [vmem:[#allocation7 + $0xc8] sm:$0xf]
          %v2846 = vld [vmem:[#allocation7 + $0xcc] sm:$0xf]
          %v2847 = vld [vmem:[#allocation7 + $0xd0] sm:$0xf]
          %v2848 = vld [vmem:[#allocation7 + $0xd4] sm:$0xf]
          %v2849 = vld [vmem:[#allocation7 + $0xd8] sm:$0xf]
          %v2850 = vld [vmem:[#allocation7 + $0xdc] sm:$0xf]
          %v2851 = vld [vmem:[#allocation7 + $0xe0] sm:$0xf]
          %v2852 = vld [vmem:[#allocation7 + $0xe4] sm:$0xf]
          %v2853 = vld [vmem:[#allocation7 + $0xe8] sm:$0xf]
          %v2854 = vld [vmem:[#allocation7 + $0xec] sm:$0xf]
          %v2855 = vld [vmem:[#allocation7 + $0xf0] sm:$0xf]
          %v2856 = vld [vmem:[#allocation7 + $0xf4] sm:$0xf]
          %v2857 = vld [vmem:[#allocation7 + $0xf8] sm:$0xf]
          %v2858 = vld [vmem:[#allocation7 + $0xfc] sm:$0xf]
          %v2859 = vlaneseq
          %v2860 = vshrl.u32 %v2859, 7
          %v2861 = vsub.s32 5, %v2860
          %v2862 = vrot.slane %v321, %v2861
          %v2895 = vunpack.c.l.b16 %v2763
          %v2896 = vunpack.c.h.b16 %v2763
          %v2897 = vunpack.c.l.b16 %v2764
          %v2898 = vunpack.c.h.b16 %v2764
          %v2899 = vunpack.c.l.b16 %v2765
          %v2900 = vunpack.c.h.b16 %v2765
          %v2901 = vunpack.c.l.b16 %v2766
          %v2902 = vunpack.c.h.b16 %v2766
          %v2903 = vunpack.c.l.b16 %v2767
          %v2904 = vunpack.c.h.b16 %v2767
          %v2905 = vunpack.c.l.b16 %v2768
          %v2906 = vunpack.c.h.b16 %v2768
          %v2907 = vunpack.c.l.b16 %v2769
          %v2908 = vunpack.c.h.b16 %v2769
          %v2909 = vunpack.c.l.b16 %v2770
          %v2910 = vunpack.c.h.b16 %v2770
          %v2911 = vunpack.c.l.b16 %v2771
          %v2912 = vunpack.c.h.b16 %v2771
          %v2913 = vunpack.c.l.b16 %v2772
          %v2914 = vunpack.c.h.b16 %v2772
          %v2915 = vunpack.c.l.b16 %v2773
          %v2916 = vunpack.c.h.b16 %v2773
          %v2917 = vunpack.c.l.b16 %v2774
          %v2918 = vunpack.c.h.b16 %v2774
          %v2919 = vunpack.c.l.b16 %v2775
          %v2920 = vunpack.c.h.b16 %v2775
          %v2921 = vunpack.c.l.b16 %v2776
          %v2922 = vunpack.c.h.b16 %v2776
          %v2923 = vunpack.c.l.b16 %v2777
          %v2924 = vunpack.c.h.b16 %v2777
          %v2925 = vunpack.c.l.b16 %v2778
          %v2926 = vunpack.c.h.b16 %v2778
          %v2927 = vunpack.c.l.b16 %v2779
          %v2928 = vunpack.c.h.b16 %v2779
          %v2929 = vunpack.c.l.b16 %v2780
          %v2930 = vunpack.c.h.b16 %v2780
          %v2931 = vunpack.c.l.b16 %v2781
          %v2932 = vunpack.c.h.b16 %v2781
          %v2933 = vunpack.c.l.b16 %v2782
          %v2934 = vunpack.c.h.b16 %v2782
          %v2935 = vunpack.c.l.b16 %v2783
          %v2936 = vunpack.c.h.b16 %v2783
          %v2937 = vunpack.c.l.b16 %v2784
          %v2938 = vunpack.c.h.b16 %v2784
          %v2939 = vunpack.c.l.b16 %v2785
          %v2940 = vunpack.c.h.b16 %v2785
          %v2941 = vunpack.c.l.b16 %v2786
          %v2942 = vunpack.c.h.b16 %v2786
          %v2943 = vunpack.c.l.b16 %v2787
          %v2944 = vunpack.c.h.b16 %v2787
          %v2945 = vunpack.c.l.b16 %v2788
          %v2946 = vunpack.c.h.b16 %v2788
          %v2947 = vunpack.c.l.b16 %v2789
          %v2948 = vunpack.c.h.b16 %v2789
          %v2949 = vunpack.c.l.b16 %v2790
          %v2950 = vunpack.c.h.b16 %v2790
          %v2951 = vunpack.c.l.b16 %v2791
          %v2952 = vunpack.c.h.b16 %v2791
          %v2953 = vunpack.c.l.b16 %v2792
          %v2954 = vunpack.c.h.b16 %v2792
          %v2955 = vunpack.c.l.b16 %v2793
          %v2956 = vunpack.c.h.b16 %v2793
          %v2957 = vunpack.c.l.b16 %v2794
          %v2958 = vunpack.c.h.b16 %v2794
          %v2959 = vpack.c.b16 %v2899, %v2895
          %v2960 = vpack.c.b16 %v2900, %v2896
          %v2961 = vpack.c.b16 %v2901, %v2897
          %v2962 = vpack.c.b16 %v2902, %v2898
          %v2963 = vpack.c.b16 %v2907, %v2903
          %v2964 = vpack.c.b16 %v2908, %v2904
          %v2965 = vpack.c.b16 %v2909, %v2905
          %v2966 = vpack.c.b16 %v2910, %v2906
          %v2967 = vpack.c.b16 %v2915, %v2911
          %v2968 = vpack.c.b16 %v2916, %v2912
          %v2969 = vpack.c.b16 %v2917, %v2913
          %v2970 = vpack.c.b16 %v2918, %v2914
          %v2971 = vpack.c.b16 %v2923, %v2919
          %v2972 = vpack.c.b16 %v2924, %v2920
          %v2973 = vpack.c.b16 %v2925, %v2921
          %v2974 = vpack.c.b16 %v2926, %v2922
          %v2975 = vpack.c.b16 %v2931, %v2927
          %v2976 = vpack.c.b16 %v2932, %v2928
          %v2977 = vpack.c.b16 %v2933, %v2929
          %v2978 = vpack.c.b16 %v2934, %v2930
          %v2979 = vpack.c.b16 %v2939, %v2935
          %v2980 = vpack.c.b16 %v2940, %v2936
          %v2981 = vpack.c.b16 %v2941, %v2937
          %v2982 = vpack.c.b16 %v2942, %v2938
          %v2983 = vpack.c.b16 %v2947, %v2943
          %v2984 = vpack.c.b16 %v2948, %v2944
          %v2985 = vpack.c.b16 %v2949, %v2945
          %v2986 = vpack.c.b16 %v2950, %v2946
          %v2987 = vpack.c.b16 %v2955, %v2951
          %v2988 = vpack.c.b16 %v2956, %v2952
          %v2989 = vpack.c.b16 %v2957, %v2953
          %v2990 = vpack.c.b16 %v2958, %v2954
          %v3087 = vunpack.c.l.b16 %v2795
          %v3088 = vunpack.c.l.b16 %v2796
          %v3089 = vunpack.c.l.b16 %v2797
          %v3090 = vunpack.c.l.b16 %v2798
          %v3091 = vunpack.c.l.b16 %v2799
          %v3092 = vunpack.c.l.b16 %v2800
          %v3093 = vunpack.c.l.b16 %v2801
          %v3094 = vunpack.c.l.b16 %v2802
          %v3095 = vunpack.c.l.b16 %v2803
          %v3096 = vunpack.c.l.b16 %v2804
          %v3097 = vunpack.c.l.b16 %v2805
          %v3098 = vunpack.c.l.b16 %v2806
          %v3099 = vunpack.c.l.b16 %v2807
          %v3100 = vunpack.c.l.b16 %v2808
          %v3101 = vunpack.c.l.b16 %v2809
          %v3102 = vunpack.c.l.b16 %v2810
          %v3103 = vunpack.c.l.b16 %v2811
          %v3104 = vunpack.c.l.b16 %v2812
          %v3105 = vunpack.c.l.b16 %v2813
          %v3106 = vunpack.c.l.b16 %v2814
          %v3107 = vunpack.c.l.b16 %v2815
          %v3108 = vunpack.c.l.b16 %v2816
          %v3109 = vunpack.c.l.b16 %v2817
          %v3110 = vunpack.c.l.b16 %v2818
          %v3111 = vunpack.c.l.b16 %v2819
          %v3112 = vunpack.c.l.b16 %v2820
          %v3113 = vunpack.c.l.b16 %v2821
          %v3114 = vunpack.c.l.b16 %v2822
          %v3115 = vunpack.c.l.b16 %v2823
          %v3116 = vunpack.c.l.b16 %v2824
          %v3117 = vunpack.c.l.b16 %v2825
          %v3118 = vunpack.c.l.b16 %v2826
          %v3119 = vunpack.c.l.b16 %v2827
          %v3120 = vunpack.c.l.b16 %v2828
          %v3121 = vunpack.c.l.b16 %v2829
          %v3122 = vunpack.c.l.b16 %v2830
          %v3123 = vunpack.c.l.b16 %v2831
          %v3124 = vunpack.c.l.b16 %v2832
          %v3125 = vunpack.c.l.b16 %v2833
          %v3126 = vunpack.c.l.b16 %v2834
          %v3127 = vunpack.c.l.b16 %v2835
          %v3128 = vunpack.c.l.b16 %v2836
          %v3129 = vunpack.c.l.b16 %v2837
          %v3130 = vunpack.c.l.b16 %v2838
          %v3131 = vunpack.c.l.b16 %v2839
          %v3132 = vunpack.c.l.b16 %v2840
          %v3133 = vunpack.c.l.b16 %v2841
          %v3134 = vunpack.c.l.b16 %v2842
          %v3135 = vunpack.c.l.b16 %v2843
          %v3136 = vunpack.c.l.b16 %v2844
          %v3137 = vunpack.c.l.b16 %v2845
          %v3138 = vunpack.c.l.b16 %v2846
          %v3139 = vunpack.c.l.b16 %v2847
          %v3140 = vunpack.c.l.b16 %v2848
          %v3141 = vunpack.c.l.b16 %v2849
          %v3142 = vunpack.c.l.b16 %v2850
          %v3143 = vunpack.c.l.b16 %v2851
          %v3144 = vunpack.c.l.b16 %v2852
          %v3145 = vunpack.c.l.b16 %v2853
          %v3146 = vunpack.c.l.b16 %v2854
          %v3147 = vunpack.c.l.b16 %v2855
          %v3148 = vunpack.c.l.b16 %v2856
          %v3149 = vunpack.c.l.b16 %v2857
          %v3150 = vunpack.c.l.b16 %v2858
          %v3151 = vpack.c.b16 %v3088, %v3087
          %v3152 = vpack.c.b16 %v3090, %v3089
          %v3153 = vpack.c.b16 %v3092, %v3091
          %v3154 = vpack.c.b16 %v3094, %v3093
          %v3155 = vpack.c.b16 %v3096, %v3095
          %v3156 = vpack.c.b16 %v3098, %v3097
          %v3157 = vpack.c.b16 %v3100, %v3099
          %v3158 = vpack.c.b16 %v3102, %v3101
          %v3159 = vpack.c.b16 %v3104, %v3103
          %v3160 = vpack.c.b16 %v3106, %v3105
          %v3161 = vpack.c.b16 %v3108, %v3107
          %v3162 = vpack.c.b16 %v3110, %v3109
          %v3163 = vpack.c.b16 %v3112, %v3111
          %v3164 = vpack.c.b16 %v3114, %v3113
          %v3165 = vpack.c.b16 %v3116, %v3115
          %v3166 = vpack.c.b16 %v3118, %v3117
          %v3167 = vpack.c.b16 %v3120, %v3119
          %v3168 = vpack.c.b16 %v3122, %v3121
          %v3169 = vpack.c.b16 %v3124, %v3123
          %v3170 = vpack.c.b16 %v3126, %v3125
          %v3171 = vpack.c.b16 %v3128, %v3127
          %v3172 = vpack.c.b16 %v3130, %v3129
          %v3173 = vpack.c.b16 %v3132, %v3131
          %v3174 = vpack.c.b16 %v3134, %v3133
          %v3175 = vpack.c.b16 %v3136, %v3135
          %v3176 = vpack.c.b16 %v3138, %v3137
          %v3177 = vpack.c.b16 %v3140, %v3139
          %v3178 = vpack.c.b16 %v3142, %v3141
          %v3179 = vpack.c.b16 %v3144, %v3143
          %v3180 = vpack.c.b16 %v3146, %v3145
          %v3181 = vpack.c.b16 %v3148, %v3147
          %v3182 = vpack.c.b16 %v3150, %v3149
          %3215 = vmatprep.subr.bf16.mxu0 0
          %3216 = vmatpush1.bf16.msra.mxu0 %v3158
          %3217 = vmatprep.subr.bf16.mxu0 0
          %3218 = vmatpush1.bf16.msra.mxu0 %v3157
          %3219 = vmatprep.subr.bf16.mxu0 0
          %3220 = vmatpush1.bf16.msra.mxu0 %v3156
          %3221 = vmatprep.subr.bf16.mxu0 0
          %3222 = vmatpush1.bf16.msra.mxu0 %v3155
          %3223 = vmatprep.subr.bf16.mxu0 0
          %3224 = vmatpush1.bf16.msra.mxu0 %v3154
          %3225 = vmatprep.subr.bf16.mxu0 0
          %3226 = vmatpush1.bf16.msra.mxu0 %v3153
          %3227 = vmatprep.subr.bf16.mxu0 0
          %3228 = vmatpush1.bf16.msra.mxu0 %v3152
          %3229 = vmatprep.subr.bf16.mxu0 0
          %3230 = vmatpush1.bf16.msra.mxu0 %v3151
          %3231 = vmatprep.subr.bf16.mxu0 0
          %3232 = vmatpush2.bf16.msra.mxu0 %v3166
          %3233 = vmatprep.subr.bf16.mxu0 0
          %3234 = vmatpush2.bf16.msra.mxu0 %v3165
          %3235 = vmatprep.subr.bf16.mxu0 0
          %3236 = vmatpush2.bf16.msra.mxu0 %v3164
          %3237 = vmatprep.subr.bf16.mxu0 0
          %3238 = vmatpush2.bf16.msra.mxu0 %v3163
          %3239 = vmatprep.subr.bf16.mxu0 0
          %3240 = vmatpush2.bf16.msra.mxu0 %v3162
          %3241 = vmatprep.subr.bf16.mxu0 0
          %3242 = vmatpush2.bf16.msra.mxu0 %v3161
          %3243 = vmatprep.subr.bf16.mxu0 0
          %3244 = vmatpush2.bf16.msra.mxu0 %v3160
          %3245 = vmatprep.subr.bf16.mxu0 0
          %3246 = vmatpush2.bf16.msra.mxu0 %v3159
          %3247 = vmatprep.mubr.bf16.mxu0 %v2960
          %3248 = vmatmul.mubr.bf16.gmra.mxu0 %v2959
          %v3249 = vpop.f32.mrf.mxu0
          %v3250 = vadd.f32 %v2862, %v3249
          %v3251 = vpop.f32.mrf.mxu0
          %v3252 = vpop.f32.mrf.mxu0
          %v3253 = vadd.f32 %v2862, %v3252
          %v3254 = vpop.f32.mrf.mxu0
          %3255 = vmatprep.mubr.bf16.mxu0 %v2964
          %3256 = vmatmul.mubr.bf16.gmra.mxu0 %v2963
          %v3257 = vpop.f32.mrf.mxu0
          %v3258 = vadd.f32 %v2862, %v3257
          %v3259 = vpop.f32.mrf.mxu0
          %v3260 = vpop.f32.mrf.mxu0
          %v3261 = vadd.f32 %v2862, %v3260
          %v3262 = vpop.f32.mrf.mxu0
          %3263 = vmatprep.mubr.bf16.mxu0 %v2968
          %3264 = vmatmul.mubr.bf16.gmra.mxu0 %v2967
          %v3265 = vpop.f32.mrf.mxu0
          %v3266 = vadd.f32 %v2862, %v3265
          %v3267 = vpop.f32.mrf.mxu0
          %v3268 = vpop.f32.mrf.mxu0
          %v3269 = vadd.f32 %v2862, %v3268
          %v3270 = vpop.f32.mrf.mxu0
          %3271 = vmatprep.mubr.bf16.mxu0 %v2972
          %3272 = vmatmul.mubr.bf16.gmra.mxu0 %v2971
          %v3273 = vpop.f32.mrf.mxu0
          %v3274 = vadd.f32 %v2862, %v3273
          %v3275 = vpop.f32.mrf.mxu0
          %v3276 = vpop.f32.mrf.mxu0
          %v3277 = vadd.f32 %v2862, %v3276
          %v3278 = vpop.f32.mrf.mxu0
          %3279 = vmatprep.mubr.bf16.mxu0 %v2976
          %3280 = vmatmul.mubr.bf16.gmra.mxu0 %v2975
          %v3281 = vpop.f32.mrf.mxu0
          %v3282 = vadd.f32 %v2862, %v3281
          %v3283 = vpop.f32.mrf.mxu0
          %v3284 = vpop.f32.mrf.mxu0
          %v3285 = vadd.f32 %v2862, %v3284
          %v3286 = vpop.f32.mrf.mxu0
          %3287 = vmatprep.mubr.bf16.mxu0 %v2980
          %3288 = vmatmul.mubr.bf16.gmra.mxu0 %v2979
          %v3289 = vpop.f32.mrf.mxu0
          %v3290 = vadd.f32 %v2862, %v3289
          %v3291 = vpop.f32.mrf.mxu0
          %v3292 = vpop.f32.mrf.mxu0
          %v3293 = vadd.f32 %v2862, %v3292
          %v3294 = vpop.f32.mrf.mxu0
          %3295 = vmatprep.mubr.bf16.mxu0 %v2984
          %3296 = vmatmul.mubr.bf16.gmra.mxu0 %v2983
          %v3297 = vpop.f32.mrf.mxu0
          %v3298 = vadd.f32 %v2862, %v3297
          %v3299 = vpop.f32.mrf.mxu0
          %v3300 = vpop.f32.mrf.mxu0
          %v3301 = vadd.f32 %v2862, %v3300
          %v3302 = vpop.f32.mrf.mxu0
          %3303 = vmatprep.mubr.bf16.mxu0 %v2988
          %3304 = vmatmul.mubr.bf16.gmra.mxu0 %v2987
          %v3305 = vpop.f32.mrf.mxu0
          %v3306 = vadd.f32 %v2862, %v3305
          %v3307 = vpop.f32.mrf.mxu0
          %v3308 = vpop.f32.mrf.mxu0
          %v3309 = vadd.f32 %v2862, %v3308
          %v3310 = vpop.f32.mrf.mxu0
          %3311 = vdwg.mxu0
          %3312 = vmatprep.subr.bf16.mxu0 0
          %3313 = vmatpush1.bf16.msra.mxu0 %v3174
          %3314 = vmatprep.subr.bf16.mxu0 0
          %3315 = vmatpush1.bf16.msra.mxu0 %v3173
          %3316 = vmatprep.subr.bf16.mxu0 0
          %3317 = vmatpush1.bf16.msra.mxu0 %v3172
          %3318 = vmatprep.subr.bf16.mxu0 0
          %3319 = vmatpush1.bf16.msra.mxu0 %v3171
          %3320 = vmatprep.subr.bf16.mxu0 0
          %3321 = vmatpush1.bf16.msra.mxu0 %v3170
          %3322 = vmatprep.subr.bf16.mxu0 0
          %3323 = vmatpush1.bf16.msra.mxu0 %v3169
          %3324 = vmatprep.subr.bf16.mxu0 0
          %3325 = vmatpush1.bf16.msra.mxu0 %v3168
          %3326 = vmatprep.subr.bf16.mxu0 0
          %3327 = vmatpush1.bf16.msra.mxu0 %v3167
          %3328 = vmatprep.subr.bf16.mxu0 0
          %3329 = vmatpush2.bf16.msra.mxu0 %v3182
          %3330 = vmatprep.subr.bf16.mxu0 0
          %3331 = vmatpush2.bf16.msra.mxu0 %v3181
          %3332 = vmatprep.subr.bf16.mxu0 0
          %3333 = vmatpush2.bf16.msra.mxu0 %v3180
          %3334 = vmatprep.subr.bf16.mxu0 0
          %3335 = vmatpush2.bf16.msra.mxu0 %v3179
          %3336 = vmatprep.subr.bf16.mxu0 0
          %3337 = vmatpush2.bf16.msra.mxu0 %v3178
          %3338 = vmatprep.subr.bf16.mxu0 0
          %3339 = vmatpush2.bf16.msra.mxu0 %v3177
          %3340 = vmatprep.subr.bf16.mxu0 0
          %3341 = vmatpush2.bf16.msra.mxu0 %v3176
          %3342 = vmatprep.subr.bf16.mxu0 0
          %3343 = vmatpush2.bf16.msra.mxu0 %v3175
          %3344 = vmatprep.mubr.bf16.mxu0 %v2962
          %3345 = vmatmul.mubr.bf16.gmra.mxu0 %v2961
          %v3346 = vpop.f32.mrf.mxu0
          %v3347 = vadd.f32 %v3250, %v3346
          %v3348 = vpop.f32.mrf.mxu0
          %v3349 = vpop.f32.mrf.mxu0
          %v3350 = vadd.f32 %v3253, %v3349
          %v3351 = vpop.f32.mrf.mxu0
          %3352 = vmatprep.mubr.bf16.mxu0 %v2966
          %3353 = vmatmul.mubr.bf16.gmra.mxu0 %v2965
          %v3354 = vpop.f32.mrf.mxu0
          %v3355 = vadd.f32 %v3258, %v3354
          %v3356 = vpop.f32.mrf.mxu0
          %v3357 = vpop.f32.mrf.mxu0
          %v3358 = vadd.f32 %v3261, %v3357
          %v3359 = vpop.f32.mrf.mxu0
          %3360 = vmatprep.mubr.bf16.mxu0 %v2970
          %3361 = vmatmul.mubr.bf16.gmra.mxu0 %v2969
          %v3362 = vpop.f32.mrf.mxu0
          %v3363 = vadd.f32 %v3266, %v3362
          %v3364 = vpop.f32.mrf.mxu0
          %v3365 = vpop.f32.mrf.mxu0
          %v3366 = vadd.f32 %v3269, %v3365
          %v3367 = vpop.f32.mrf.mxu0
          %3368 = vmatprep.mubr.bf16.mxu0 %v2974
          %3369 = vmatmul.mubr.bf16.gmra.mxu0 %v2973
          %v3370 = vpop.f32.mrf.mxu0
          %v3371 = vadd.f32 %v3274, %v3370
          %v3372 = vpop.f32.mrf.mxu0
          %v3373 = vpop.f32.mrf.mxu0
          %v3374 = vadd.f32 %v3277, %v3373
          %v3375 = vpop.f32.mrf.mxu0
          %3376 = vmatprep.mubr.bf16.mxu0 %v2978
          %3377 = vmatmul.mubr.bf16.gmra.mxu0 %v2977
          %v3378 = vpop.f32.mrf.mxu0
          %v3379 = vadd.f32 %v3282, %v3378
          %v3380 = vpop.f32.mrf.mxu0
          %v3381 = vpop.f32.mrf.mxu0
          %v3382 = vadd.f32 %v3285, %v3381
          %v3383 = vpop.f32.mrf.mxu0
          %3384 = vmatprep.mubr.bf16.mxu0 %v2982
          %3385 = vmatmul.mubr.bf16.gmra.mxu0 %v2981
          %v3386 = vpop.f32.mrf.mxu0
          %v3387 = vadd.f32 %v3290, %v3386
          %v3388 = vpop.f32.mrf.mxu0
          %v3389 = vpop.f32.mrf.mxu0
          %v3390 = vadd.f32 %v3293, %v3389
          %v3391 = vpop.f32.mrf.mxu0
          %3392 = vmatprep.mubr.bf16.mxu0 %v2986
          %3393 = vmatmul.mubr.bf16.gmra.mxu0 %v2985
          %v3394 = vpop.f32.mrf.mxu0
          %v3395 = vadd.f32 %v3298, %v3394
          %v3396 = vpop.f32.mrf.mxu0
          %v3397 = vpop.f32.mrf.mxu0
          %v3398 = vadd.f32 %v3301, %v3397
          %v3399 = vpop.f32.mrf.mxu0
          %3400 = vmatprep.mubr.bf16.mxu0 %v2990
          %3401 = vmatmul.mubr.bf16.gmra.mxu0 %v2989
          %v3402 = vpop.f32.mrf.mxu0
          %v3403 = vadd.f32 %v3306, %v3402
          %v3404 = vpop.f32.mrf.mxu0
          %v3405 = vpop.f32.mrf.mxu0
          %v3406 = vadd.f32 %v3309, %v3405
          %v3407 = vpop.f32.mrf.mxu0
          %3408 = vdwg.mxu0
          %3409 = vst [vmem:[%s318] sm:$0xff] %v3347
          %3410 = vst [vmem:[%s318 + $0x8] sm:$0xff] %v3350
          %3411 = vst [vmem:[%s318 + $0x10] sm:$0xff] %v3355
          %3412 = vst [vmem:[%s318 + $0x18] sm:$0xff] %v3358
          %3413 = vst [vmem:[%s318 + $0x20] sm:$0xff] %v3363
          %3414 = vst [vmem:[%s318 + $0x28] sm:$0xff] %v3366
          %3415 = vst [vmem:[%s318 + $0x30] sm:$0xff] %v3371
          %3416 = vst [vmem:[%s318 + $0x38] sm:$0xff] %v3374
          %3417 = vst [vmem:[%s318 + $0x40] sm:$0xff] %v3379
          %3418 = vst [vmem:[%s318 + $0x48] sm:$0xff] %v3382
          %3419 = vst [vmem:[%s318 + $0x50] sm:$0xff] %v3387
          %3420 = vst [vmem:[%s318 + $0x58] sm:$0xff] %v3390
          %3421 = vst [vmem:[%s318 + $0x60] sm:$0xff] %v3395
          %3422 = vst [vmem:[%s318 + $0x68] sm:$0xff] %v3398
          %3423 = vst [vmem:[%s318 + $0x70] sm:$0xff] %v3403
          %3424 = vst [vmem:[%s318 + $0x78] sm:$0xff] %v3406
        $region64: #{dqn_forward.1} parent=39 // pred_fallthru
          _
        %s3425 = smul.u32 16, %s25
        %p3426 = scmp.lt.s32.totalorder %s3425, 31
        %s3427 = scalar_select %p3426, %s3425, 31
        %s3428 = smul.addr %s3427, 8
        %s3429 = scalar_lea.vmem %s5, %s3428
        // Predicated region
        $region65: #{dqn_forward.1} parent=39 // pred_check
          %p3430 = pneg %p166
        $region66: #{dqn_forward.1} parent=39 // pred_check_branch
          %3432 = sbr.rel (%p3430) target = $region68
        $region67: #{dqn_forward.1} parent=39 // pred_region
          %s3433 = smul.u32 16, %s25
        $region68: #{dqn_forward.1} parent=39 // pred_fallthru
          _
      $region40: #{dqn_forward.1} parent=5 // pred_fallthru
        _
      %p3434 = scmp.le.s32.totalorder 2, %s16
      // Predicated region
      $region69: #{dqn_forward.1} parent=5 // pred_check
        %p3435 = pneg %p3434
      $region70: #{dqn_forward.1} parent=5 // pred_check_branch
        %3437 = sbr.rel (%p3435) target = $region72
      $region71: #{dqn_forward.1} parent=5 // pred_region
        %s3438 = ssub.s32 %s16, 2
        // Predicated region
        $region73: #{dqn_forward.1} parent=71 // pred_check
          %p3439 = pneg %p172
        $region74: #{dqn_forward.1} parent=71 // pred_check_branch
          %3441 = sbr.rel (%p3439) target = $region76
        $region75: #{dqn_forward.1} parent=71 // pred_region
          %s3442 = smul.u32 16, %s27
          %p3443 = scmp.lt.s32.totalorder %s3442, 31
          %s3444 = scalar_select %p3443, %s3442, 31
          %s3445 = smul.addr %s3444, 8
          %s3446 = scalar_lea.vmem %s5, %s3445
        $region76: #{dqn_forward.1} parent=71 // pred_fallthru
          _
      $region72: #{dqn_forward.1} parent=5 // pred_fallthru
        _
    $region6: #{dqn_forward.1} parent=1 // loop_footer
      %s20 = sadd.s32 1, %s16
    $region7: #{dqn_forward.1} parent=1 // loop_footer_branch
      %15 = sbr.rel target = $region3
    $region8: #{dqn_forward.1} parent=1 // loop_exit
      _
    %3447 = vsyncpa [#allocation4], 1
    %s3448 = scalar_lea.sflag [#allocation4], 1
    %3449 = vsyncpa %s3448, 1
    %3450 = vsyncpa [#allocation6], 1
    %s3451 = scalar_lea.sflag [#allocation6], 1
    %3452 = vsyncpa %s3451, 1
    %3453 = vsyncpa [#allocation9], 1

</llo_original>
